<compile_context>
chip_gen: v7x
topology: tpu7x:2x2x1
jax: 0.10.0
libtpu: 0.0.40
codegen_flags: <defaults>
</compile_context>

<pallas_src>
import functools
import math

import jax
import jax.numpy as jnp
from jax.experimental import pallas as pl
from jax.experimental.pallas import tpu as pltpu


def _vmem_limit_bytes():
    """3/4 of the chip's VMEM (96 MiB on v5e/v6e, 48 MiB on v7x), capped."""
    try:
        cap = pltpu.get_tpu_info().vmem_capacity_bytes
    except Exception:
        cap = None
    if not cap:
        cap = 64 * 1024 * 1024                     # conservative (v7x-sized)
    return min((cap * 3) // 4, 100 * 1024 * 1024)


def _choose_tiling(T_out, V, target_lanes=2048, min_lanes=512):
    """Pick (TT, Vp): time-tile length and (minimal) lane padding of V.

    Activations are kept lane-dense as a flattened (T*Vp) trailing axis, so
    tiled output blocks need (TT*Vp) % 128 == 0 (or the full extent).  V is
    zero-padded to Vp only when the raw V admits no 128-aligned time tile
    (e.g. V=25 in real ST-GCN shapes).
    """
    if T_out * V <= target_lanes:
        return T_out, V                            # whole row fits one block

    def best_tt(vp):
        cands = [tt for tt in range(1, T_out + 1)
                 if T_out % tt == 0 and (tt * vp) % 128 == 0
                 and tt * vp <= target_lanes]
        return max(cands) if cands else None

    for vp in sorted({V, -(-V // 8) * 8, -(-V // 16) * 16, -(-V // 32) * 32}):
        tt = best_tt(vp)
        if tt is not None and tt * vp >= min_lanes:
            return tt, vp
    # TODO(synk): when V is (nearly) coprime with 128 and T_out has no suitable
    # divisor, tile C_out instead of falling back to full-extent time blocks.
    return T_out, V


def _conv_kernel(x_ref, w_ref, y_ref, stats_ref, *,
                 C_in, C_out, K, Vp, TT, n_tt, stride):
    """One (sample n, time-tile tt) grid step of the temporal conv.

    x_ref:     (1, C_in, T_pad*Vp)  full padded sample, lane-dense flat layout
                                    (resident across the inner tt axis)
    w_ref:     (K, C_out, C_in)     taps-leading weight
    y_ref:     (1, C_out, TT*Vp)    lane-dense conv output tile
    stats_ref: (1, 2, C_out)        per-sample [sum; sum_sq] rows, accumulated
                                    over the (inner, "arbitrary") tt axis
    """
    tt = pl.program_id(1)
    L = TT * Vp
    Wt = (TT - 1) * stride + K            # temporal window (with halo) per tile

    if n_tt == 1:
        base = 0                          # single tile: fully static slicing
    else:
        # Tile starts are 128-lane aligned by construction ((TT*Vp) % 128 == 0).
        base = pl.multiple_of(tt * (TT * stride * Vp), TT * stride * Vp)
    win = x_ref[0, :, pl.ds(base, Wt * Vp)]                  # (C_in, Wt*Vp)

    def tap(k):
        if stride == 1:
            return win[:, k * Vp:k * Vp + L]                 # static lane slice
        # stride > 1 (uncommon path): strided time slice via a 3-D view.
        xw = win.reshape(C_in, Wt, Vp)
        return jax.lax.slice(xw, (0, k, 0),
                             (C_in, k + (TT - 1) * stride + 1, Vp),
                             (1, stride, 1)).reshape(C_in, L)

    # K accumulating MXU dots; no (K*C_in, L) im2col buffer is materialized.
    acc = jnp.dot(w_ref[0], tap(0), preferred_element_type=jnp.float32)
    for k in range(1, K):
        acc = acc + jnp.dot(w_ref[k], tap(k), preferred_element_type=jnp.float32)
    # Conv bias is intentionally omitted: it cancels exactly under
    # training-mode (batch-statistic) BatchNorm.

    y_ref[0] = acc.astype(y_ref.dtype)                       # lane-dense store

    @pl.when(tt == 0)
    def _():
        stats_ref[...] = jnp.zeros_like(stats_ref)

    # Lane-dense (2, C_out) partial stats in f32 (sublane concat, unmasked store).
    s = jnp.sum(acc, axis=1).reshape(1, C_out)
    sq = jnp.sum(acc * acc, axis=1).reshape(1, C_out)
    stats_ref[...] += jnp.concatenate([s, sq], axis=0).reshape(1, 2, C_out)


def _bn_kernel(y_ref, scale_ref, shift_ref, o_ref):
    # y_ref / o_ref: (1, C_out, T_out*Vp) lane-dense per-sample blocks;
    # scale / shift: (C_out, 1), broadcast along the flattened (T, V) lanes.
    o_ref[0] = (y_ref[0] * scale_ref[...] + shift_ref[...]).astype(o_ref.dtype)


@functools.partial(jax.jit, static_argnames=("stride", "eps"))
def unit_tcn_forward(x, w, b, gamma, beta, *, stride=1, eps=1e-5):
    """x: (N, C_in, T, V); w: (C_out, C_in, K); b/gamma/beta: (C_out,).

    Note: `b` (the conv bias) is accepted for interface parity but never added;
    a per-channel constant cancels exactly under batch-statistic BatchNorm.
    """
    del b
    N, C_in, T, V = x.shape
    C_out, _, K = w.shape
    pad = (K - 1) // 2
    T_pad = T + 2 * pad
    T_out = (T_pad - K) // stride + 1

    TT, Vp = _choose_tiling(T_out, V)
    n_tt = T_out // TT
    L = TT * Vp
    vmem_limit = _vmem_limit_bytes()

    # Zero-pad the temporal halo (and, if needed, the vertex axis to Vp) and
    # flatten (T_pad, Vp) into one lane-dense trailing axis: dense DMA streams,
    # no lane-padded (T, V) blocks, no per-step relayout in the kernel.
    # TODO(synk): the temporal halo is still materialized via jnp.pad (one extra
    # HBM round trip of the input); in-kernel zero-masked taps would remove it.
    x_pad = jnp.pad(x, ((0, 0), (0, 0), (pad, pad), (0, Vp - V)))
    x_flat = x_pad.reshape(N, C_in, T_pad * Vp)

    # Taps-leading weight so each tap is a clean leading-axis index in-kernel.
    w3 = jnp.transpose(w, (2, 0, 1))                         # (K, C_out, C_in)

    conv_kernel = functools.partial(_conv_kernel, C_in=C_in, C_out=C_out, K=K,
                                    Vp=Vp, TT=TT, n_tt=n_tt, stride=stride)

    y_flat, stats = pl.pallas_call(
        conv_kernel,
        grid=(N, n_tt),
        in_specs=[
            pl.BlockSpec((1, C_in, T_pad * Vp), lambda n, t: (n, 0, 0)),
            pl.BlockSpec((K, C_out, C_in), lambda n, t: (0, 0, 0)),
        ],
        out_specs=[
            pl.BlockSpec((1, C_out, L), lambda n, t: (n, 0, t)),
            pl.BlockSpec((1, 2, C_out), lambda n, t: (n, 0, 0)),
        ],
        out_shape=[
            jax.ShapeDtypeStruct((N, C_out, T_out * Vp), jnp.float32),
            jax.ShapeDtypeStruct((N, 2, C_out), jnp.float32),
        ],
        compiler_params=pltpu.CompilerParams(
            dimension_semantics=("parallel", "arbitrary"),
            vmem_limit_bytes=vmem_limit),
    )(x_flat, w3)

    # Tiny glue: fold batch statistics into per-channel scale/shift
    # (training-mode BN: batch stats, biased variance).  Padded vertex lanes
    # hold exact zeros and contribute nothing; divide by the true count.
    # TODO(synk): running_mean/running_var buffer updates are not modeled; they
    # do not affect the forward output.
    count = jnp.float32(N * T_out * V)
    mean = jnp.sum(stats[:, 0, :], axis=0) / count
    var = jnp.sum(stats[:, 1, :], axis=0) / count - mean * mean
    scale = gamma * jax.lax.rsqrt(var + eps)
    shift = beta - mean * scale

    out_flat = pl.pallas_call(
        _bn_kernel,
        grid=(N,),
        in_specs=[
            pl.BlockSpec((1, C_out, T_out * Vp), lambda n: (n, 0, 0)),
            pl.BlockSpec((C_out, 1), lambda n: (0, 0)),
            pl.BlockSpec((C_out, 1), lambda n: (0, 0)),
        ],
        out_specs=pl.BlockSpec((1, C_out, T_out * Vp), lambda n: (n, 0, 0)),
        out_shape=jax.ShapeDtypeStruct((N, C_out, T_out * Vp), jnp.float32),
        input_output_aliases={0: 0},   # y is dead after BN; reuse its HBM buffer
        compiler_params=pltpu.CompilerParams(
            dimension_semantics=("parallel",),
            vmem_limit_bytes=vmem_limit),
    )(y_flat, scale.reshape(C_out, 1), shift.reshape(C_out, 1))

    out = out_flat.reshape(N, C_out, T_out, Vp)
    if Vp != V:
        out = out[..., :V]
    return out


if __name__ == "__main__":
    key = jax.random.PRNGKey(0)
    N, C_in, C_out, T, V, K, stride = 2, 4, 8, 16, 16, 9, 1
    pad = (K - 1) // 2

    kx, kw = jax.random.split(key)
    x = jax.random.normal(kx, (N, C_in, T, V), jnp.float32)

    # Deterministic parameter init mirroring the module's __init__:
    fan_out = C_out * K * 1                       # kaiming_normal_, mode='fan_out'
    std = (2.0 / fan_out) ** 0.5
    w = std * jax.random.normal(kw, (C_out, C_in, K), jnp.float32)
    b = jnp.zeros((C_out,), jnp.float32)          # conv_init: bias = 0
    gamma = jnp.ones((C_out,), jnp.float32)       # bn_init(bn, 1)
    beta = jnp.zeros((C_out,), jnp.float32)

    out = jax.block_until_ready(unit_tcn_forward(x, w, b, gamma, beta, stride=stride))

    # Pure-JAX reference (conv + training-mode BN) for a sanity check.
    ref_conv = jax.lax.conv_general_dilated(
        x, w[..., None], window_strides=(stride, 1),
        padding=[(pad, pad), (0, 0)],
        dimension_numbers=("NCHW", "OIHW", "NCHW"),
    ) + b.reshape(1, C_out, 1, 1)
    mu = ref_conv.mean(axis=(0, 2, 3), keepdims=True)
    var = ref_conv.var(axis=(0, 2, 3), keepdims=True)  # biased
    ref = (ref_conv - mu) / jnp.sqrt(var + 1e-5) * gamma.reshape(1, C_out, 1, 1) \
          + beta.reshape(1, C_out, 1, 1)

    assert out.shape == (N, C_out, T, V), out.shape
    assert jnp.allclose(out, ref, atol=1e-3, rtol=1e-3), float(jnp.max(jnp.abs(out - ref)))
    print("KERNEL_OK")
</pallas_src>

<mosaic_0001>
module attributes {stable_mosaic.version = 11 : i64} {
  func.func @_conv_kernel(%arg0: i32, %arg1: i32, %arg2: memref<1x4x384xf32, #tpu.memory_space<vmem>>, %arg3: memref<9x8x4xf32, #tpu.memory_space<vmem>>, %arg4: memref<1x8x256xf32, #tpu.memory_space<vmem>>, %arg5: memref<1x2x8xf32, #tpu.memory_space<vmem>>) attributes {dimension_semantics = [#tpu.dimension_semantics<parallel>, #tpu.dimension_semantics<arbitrary>], iteration_bounds = array<i64: 2, 1>, scalar_prefetch = 0 : i64, scratch_operands = 0 : i64, tpu.core_type = #tpu.core_type<tc>, window_params = [{transform_indices = @transform_0, window_bounds = array<i64: 1, 4, 384>}, {pipeline_mode = #tpu.pipeline_mode<synchronous>, transform_indices = @transform_1, window_bounds = array<i64: 9, 8, 4>}, {transform_indices = @transform_2, window_bounds = array<i64: 1, 8, 256>}, {transform_indices = @transform_3, window_bounds = array<i64: 1, 2, 8>}]} {
    %c0 = arith.constant 0 : index
    %c0_0 = arith.constant 0 : index
    %c0_1 = arith.constant 0 : index
    %0 = vector.load %arg2[%c0, %c0_0, %c0_1] : memref<1x4x384xf32, #tpu.memory_space<vmem>>, vector<1x4x384xf32>
    %1 = vector.shape_cast %0 : vector<1x4x384xf32> to vector<4x384xf32>
    %c0_2 = arith.constant 0 : index
    %c0_3 = arith.constant 0 : index
    %c0_4 = arith.constant 0 : index
    %2 = vector.load %arg3[%c0_2, %c0_3, %c0_4] : memref<9x8x4xf32, #tpu.memory_space<vmem>>, vector<1x8x4xf32>
    %3 = vector.shape_cast %2 : vector<1x8x4xf32> to vector<8x4xf32>
    %4 = vector.extract_strided_slice %1 {offsets = [0, 0], sizes = [4, 256], strides = [1, 1]} : vector<4x384xf32> to vector<4x256xf32>
    %cst = arith.constant dense<0.000000e+00> : vector<8x256xf32>
    %5 = tpu.matmul %3, %4, %cst {dimension_numbers = #tpu.dot_dimension_numbers<[1], [0], [0], [1], [0, 0, 1, 1], [], []>} : vector<8x4xf32>, vector<4x256xf32>, vector<8x256xf32> -> vector<8x256xf32>
    %c1 = arith.constant 1 : index
    %c0_5 = arith.constant 0 : index
    %c0_6 = arith.constant 0 : index
    %6 = vector.load %arg3[%c1, %c0_5, %c0_6] : memref<9x8x4xf32, #tpu.memory_space<vmem>>, vector<1x8x4xf32>
    %7 = vector.shape_cast %6 : vector<1x8x4xf32> to vector<8x4xf32>
    %8 = vector.extract_strided_slice %1 {offsets = [0, 16], sizes = [4, 256], strides = [1, 1]} : vector<4x384xf32> to vector<4x256xf32>
    %cst_7 = arith.constant dense<0.000000e+00> : vector<8x256xf32>
    %9 = tpu.matmul %7, %8, %cst_7 {dimension_numbers = #tpu.dot_dimension_numbers<[1], [0], [0], [1], [0, 0, 1, 1], [], []>} : vector<8x4xf32>, vector<4x256xf32>, vector<8x256xf32> -> vector<8x256xf32>
    %10 = arith.addf %5, %9 : vector<8x256xf32>
    %c2 = arith.constant 2 : index
    %c0_8 = arith.constant 0 : index
    %c0_9 = arith.constant 0 : index
    %11 = vector.load %arg3[%c2, %c0_8, %c0_9] : memref<9x8x4xf32, #tpu.memory_space<vmem>>, vector<1x8x4xf32>
    %12 = vector.shape_cast %11 : vector<1x8x4xf32> to vector<8x4xf32>
    %13 = vector.extract_strided_slice %1 {offsets = [0, 32], sizes = [4, 256], strides = [1, 1]} : vector<4x384xf32> to vector<4x256xf32>
    %cst_10 = arith.constant dense<0.000000e+00> : vector<8x256xf32>
    %14 = tpu.matmul %12, %13, %cst_10 {dimension_numbers = #tpu.dot_dimension_numbers<[1], [0], [0], [1], [0, 0, 1, 1], [], []>} : vector<8x4xf32>, vector<4x256xf32>, vector<8x256xf32> -> vector<8x256xf32>
    %15 = arith.addf %10, %14 : vector<8x256xf32>
    %c3 = arith.constant 3 : index
    %c0_11 = arith.constant 0 : index
    %c0_12 = arith.constant 0 : index
    %16 = vector.load %arg3[%c3, %c0_11, %c0_12] : memref<9x8x4xf32, #tpu.memory_space<vmem>>, vector<1x8x4xf32>
    %17 = vector.shape_cast %16 : vector<1x8x4xf32> to vector<8x4xf32>
    %18 = vector.extract_strided_slice %1 {offsets = [0, 48], sizes = [4, 256], strides = [1, 1]} : vector<4x384xf32> to vector<4x256xf32>
    %cst_13 = arith.constant dense<0.000000e+00> : vector<8x256xf32>
    %19 = tpu.matmul %17, %18, %cst_13 {dimension_numbers = #tpu.dot_dimension_numbers<[1], [0], [0], [1], [0, 0, 1, 1], [], []>} : vector<8x4xf32>, vector<4x256xf32>, vector<8x256xf32> -> vector<8x256xf32>
    %20 = arith.addf %15, %19 : vector<8x256xf32>
    %c4 = arith.constant 4 : index
    %c0_14 = arith.constant 0 : index
    %c0_15 = arith.constant 0 : index
    %21 = vector.load %arg3[%c4, %c0_14, %c0_15] : memref<9x8x4xf32, #tpu.memory_space<vmem>>, vector<1x8x4xf32>
    %22 = vector.shape_cast %21 : vector<1x8x4xf32> to vector<8x4xf32>
    %23 = vector.extract_strided_slice %1 {offsets = [0, 64], sizes = [4, 256], strides = [1, 1]} : vector<4x384xf32> to vector<4x256xf32>
    %cst_16 = arith.constant dense<0.000000e+00> : vector<8x256xf32>
    %24 = tpu.matmul %22, %23, %cst_16 {dimension_numbers = #tpu.dot_dimension_numbers<[1], [0], [0], [1], [0, 0, 1, 1], [], []>} : vector<8x4xf32>, vector<4x256xf32>, vector<8x256xf32> -> vector<8x256xf32>
    %25 = arith.addf %20, %24 : vector<8x256xf32>
    %c5 = arith.constant 5 : index
    %c0_17 = arith.constant 0 : index
    %c0_18 = arith.constant 0 : index
    %26 = vector.load %arg3[%c5, %c0_17, %c0_18] : memref<9x8x4xf32, #tpu.memory_space<vmem>>, vector<1x8x4xf32>
    %27 = vector.shape_cast %26 : vector<1x8x4xf32> to vector<8x4xf32>
    %28 = vector.extract_strided_slice %1 {offsets = [0, 80], sizes = [4, 256], strides = [1, 1]} : vector<4x384xf32> to vector<4x256xf32>
    %cst_19 = arith.constant dense<0.000000e+00> : vector<8x256xf32>
    %29 = tpu.matmul %27, %28, %cst_19 {dimension_numbers = #tpu.dot_dimension_numbers<[1], [0], [0], [1], [0, 0, 1, 1], [], []>} : vector<8x4xf32>, vector<4x256xf32>, vector<8x256xf32> -> vector<8x256xf32>
    %30 = arith.addf %25, %29 : vector<8x256xf32>
    %c6 = arith.constant 6 : index
    %c0_20 = arith.constant 0 : index
    %c0_21 = arith.constant 0 : index
    %31 = vector.load %arg3[%c6, %c0_20, %c0_21] : memref<9x8x4xf32, #tpu.memory_space<vmem>>, vector<1x8x4xf32>
    %32 = vector.shape_cast %31 : vector<1x8x4xf32> to vector<8x4xf32>
    %33 = vector.extract_strided_slice %1 {offsets = [0, 96], sizes = [4, 256], strides = [1, 1]} : vector<4x384xf32> to vector<4x256xf32>
    %cst_22 = arith.constant dense<0.000000e+00> : vector<8x256xf32>
    %34 = tpu.matmul %32, %33, %cst_22 {dimension_numbers = #tpu.dot_dimension_numbers<[1], [0], [0], [1], [0, 0, 1, 1], [], []>} : vector<8x4xf32>, vector<4x256xf32>, vector<8x256xf32> -> vector<8x256xf32>
    %35 = arith.addf %30, %34 : vector<8x256xf32>
    %c7 = arith.constant 7 : index
    %c0_23 = arith.constant 0 : index
    %c0_24 = arith.constant 0 : index
    %36 = vector.load %arg3[%c7, %c0_23, %c0_24] : memref<9x8x4xf32, #tpu.memory_space<vmem>>, vector<1x8x4xf32>
    %37 = vector.shape_cast %36 : vector<1x8x4xf32> to vector<8x4xf32>
    %38 = vector.extract_strided_slice %1 {offsets = [0, 112], sizes = [4, 256], strides = [1, 1]} : vector<4x384xf32> to vector<4x256xf32>
    %cst_25 = arith.constant dense<0.000000e+00> : vector<8x256xf32>
    %39 = tpu.matmul %37, %38, %cst_25 {dimension_numbers = #tpu.dot_dimension_numbers<[1], [0], [0], [1], [0, 0, 1, 1], [], []>} : vector<8x4xf32>, vector<4x256xf32>, vector<8x256xf32> -> vector<8x256xf32>
    %40 = arith.addf %35, %39 : vector<8x256xf32>
    %c8 = arith.constant 8 : index
    %c0_26 = arith.constant 0 : index
    %c0_27 = arith.constant 0 : index
    %41 = vector.load %arg3[%c8, %c0_26, %c0_27] : memref<9x8x4xf32, #tpu.memory_space<vmem>>, vector<1x8x4xf32>
    %42 = vector.shape_cast %41 : vector<1x8x4xf32> to vector<8x4xf32>
    %43 = vector.extract_strided_slice %1 {offsets = [0, 128], sizes = [4, 256], strides = [1, 1]} : vector<4x384xf32> to vector<4x256xf32>
    %cst_28 = arith.constant dense<0.000000e+00> : vector<8x256xf32>
    %44 = tpu.matmul %42, %43, %cst_28 {dimension_numbers = #tpu.dot_dimension_numbers<[1], [0], [0], [1], [0, 0, 1, 1], [], []>} : vector<8x4xf32>, vector<4x256xf32>, vector<8x256xf32> -> vector<8x256xf32>
    %45 = arith.addf %40, %44 : vector<8x256xf32>
    %c0_29 = arith.constant 0 : index
    %c0_30 = arith.constant 0 : index
    %c0_31 = arith.constant 0 : index
    %46 = vector.load %arg4[%c0_29, %c0_30, %c0_31] : memref<1x8x256xf32, #tpu.memory_space<vmem>>, vector<1x8x256xf32>
    %47 = vector.shape_cast %46 : vector<1x8x256xf32> to vector<8x256xf32>
    %48 = vector.shape_cast %45 : vector<8x256xf32> to vector<1x8x256xf32>
    tpu.vector_store %arg4[%c0_29, %c0_30, %c0_31], %48 {strides = array<i32>} : memref<1x8x256xf32, #tpu.memory_space<vmem>>, vector<1x8x256xf32>,
    %c0_i32 = arith.constant 0 : i32
    %49 = arith.cmpi eq, %arg1, %c0_i32 : i32
    %50 = arith.extui %49 : i1 to i32
    %c0_i32_32 = arith.constant 0 : i32
    %51 = arith.cmpi ne, %50, %c0_i32_32 : i32
    scf.if %51 {
      %cst_41 = arith.constant 0.000000e+00 : f32
      %62 = vector.broadcast %cst_41 : f32 to vector<1x2x8xf32>
      %c0_42 = arith.constant 0 : index
      %c0_43 = arith.constant 0 : index
      %c0_44 = arith.constant 0 : index
      %63 = vector.load %arg5[%c0_42, %c0_43, %c0_44] : memref<1x2x8xf32, #tpu.memory_space<vmem>>, vector<1x2x8xf32>
      tpu.vector_store %arg5[%c0_42, %c0_43, %c0_44], %62 {strides = array<i32>} : memref<1x2x8xf32, #tpu.memory_space<vmem>>, vector<1x2x8xf32>,
    } else {
    }
    %cst_33 = arith.constant dense<0.000000e+00> : vector<8xf32>
    %52 = vector.multi_reduction <add>, %45, %cst_33 [1] : vector<8x256xf32> to vector<8xf32>
    %53 = vector.shape_cast %52 : vector<8xf32> to vector<1x8xf32>
    %54 = arith.mulf %45, %45 : vector<8x256xf32>
    %cst_34 = arith.constant dense<0.000000e+00> : vector<8xf32>
    %55 = vector.multi_reduction <add>, %54, %cst_34 [1] : vector<8x256xf32> to vector<8xf32>
    %56 = vector.shape_cast %55 : vector<8xf32> to vector<1x8xf32>
    %c0_35 = arith.constant 0 : index
    %c0_36 = arith.constant 0 : index
    %c0_37 = arith.constant 0 : index
    %57 = vector.load %arg5[%c0_35, %c0_36, %c0_37] : memref<1x2x8xf32, #tpu.memory_space<vmem>>, vector<1x2x8xf32>
    %58 = tpu.concatenate %53, %56 in 0 : vector<1x8xf32>, vector<1x8xf32> -> vector<2x8xf32>
    %59 = vector.shape_cast %58 : vector<2x8xf32> to vector<1x2x8xf32>
    %60 = arith.addf %57, %59 : vector<1x2x8xf32>
    %c0_38 = arith.constant 0 : index
    %c0_39 = arith.constant 0 : index
    %c0_40 = arith.constant 0 : index
    %61 = vector.load %arg5[%c0_38, %c0_39, %c0_40] : memref<1x2x8xf32, #tpu.memory_space<vmem>>, vector<1x2x8xf32>
    tpu.vector_store %arg5[%c0_38, %c0_39, %c0_40], %60 {strides = array<i32>} : memref<1x2x8xf32, #tpu.memory_space<vmem>>, vector<1x2x8xf32>,
    return
  }
  func.func @transform_0(%arg0: i32, %arg1: i32) -> (i32, i32, i32) {
    %c0_i32 = arith.constant 0 : i32
    %c0_i32_0 = arith.constant 0 : i32
    %c0_i32_1 = arith.constant 0 : i32
    return %arg0, %c0_i32, %c0_i32_0 : i32, i32, i32
  }
  func.func @transform_1(%arg0: i32, %arg1: i32) -> (i32, i32, i32) {
    %c0_i32 = arith.constant 0 : i32
    %c0_i32_0 = arith.constant 0 : i32
    %c0_i32_1 = arith.constant 0 : i32
    %c0_i32_2 = arith.constant 0 : i32
    return %c0_i32, %c0_i32_0, %c0_i32_1 : i32, i32, i32
  }
  func.func @transform_2(%arg0: i32, %arg1: i32) -> (i32, i32, i32) {
    %c0_i32 = arith.constant 0 : i32
    %c0_i32_0 = arith.constant 0 : i32
    return %arg0, %c0_i32, %arg1 : i32, i32, i32
  }
  func.func @transform_3(%arg0: i32, %arg1: i32) -> (i32, i32, i32) {
    %c0_i32 = arith.constant 0 : i32
    %c0_i32_0 = arith.constant 0 : i32
    %c0_i32_1 = arith.constant 0 : i32
    return %arg0, %c0_i32, %c0_i32_0 : i32, i32, i32
  }
}

module attributes {stable_mosaic.version = 11 : i64} {
  func.func @_bn_kernel(%arg0: i32, %arg1: memref<1x8x256xf32, #tpu.memory_space<vmem>>, %arg2: memref<8x1xf32, #tpu.memory_space<vmem>>, %arg3: memref<8x1xf32, #tpu.memory_space<vmem>>, %arg4: memref<1x8x256xf32, #tpu.memory_space<vmem>>) attributes {dimension_semantics = [#tpu.dimension_semantics<parallel>], iteration_bounds = array<i64: 2>, scalar_prefetch = 0 : i64, scratch_operands = 0 : i64, tpu.core_type = #tpu.core_type<tc>, window_params = [{transform_indices = @transform_0, window_bounds = array<i64: 1, 8, 256>}, {pipeline_mode = #tpu.pipeline_mode<synchronous>, transform_indices = @transform_1, window_bounds = array<i64: 8, 1>}, {pipeline_mode = #tpu.pipeline_mode<synchronous>, transform_indices = @transform_2, window_bounds = array<i64: 8, 1>}, {transform_indices = @transform_3, window_bounds = array<i64: 1, 8, 256>}]} {
    %c0 = arith.constant 0 : index
    %c0_0 = arith.constant 0 : index
    %c0_1 = arith.constant 0 : index
    %0 = vector.load %arg1[%c0, %c0_0, %c0_1] : memref<1x8x256xf32, #tpu.memory_space<vmem>>, vector<1x8x256xf32>
    %1 = vector.shape_cast %0 : vector<1x8x256xf32> to vector<8x256xf32>
    %c0_2 = arith.constant 0 : index
    %c0_3 = arith.constant 0 : index
    %2 = vector.load %arg2[%c0_2, %c0_3] : memref<8x1xf32, #tpu.memory_space<vmem>>, vector<8x1xf32>
    %3 = vector.broadcast %2 : vector<8x1xf32> to vector<8x256xf32>
    %4 = arith.mulf %1, %3 : vector<8x256xf32>
    %c0_4 = arith.constant 0 : index
    %c0_5 = arith.constant 0 : index
    %5 = vector.load %arg3[%c0_4, %c0_5] : memref<8x1xf32, #tpu.memory_space<vmem>>, vector<8x1xf32>
    %6 = vector.broadcast %5 : vector<8x1xf32> to vector<8x256xf32>
    %7 = arith.addf %4, %6 : vector<8x256xf32>
    %c0_6 = arith.constant 0 : index
    %c0_7 = arith.constant 0 : index
    %c0_8 = arith.constant 0 : index
    %8 = vector.load %arg4[%c0_6, %c0_7, %c0_8] : memref<1x8x256xf32, #tpu.memory_space<vmem>>, vector<1x8x256xf32>
    %9 = vector.shape_cast %8 : vector<1x8x256xf32> to vector<8x256xf32>
    %10 = vector.shape_cast %7 : vector<8x256xf32> to vector<1x8x256xf32>
    tpu.vector_store %arg4[%c0_6, %c0_7, %c0_8], %10 {strides = array<i32>} : memref<1x8x256xf32, #tpu.memory_space<vmem>>, vector<1x8x256xf32>,
    return
  }
  func.func @transform_0(%arg0: i32) -> (i32, i32, i32) {
    %c0_i32 = arith.constant 0 : i32
    %c0_i32_0 = arith.constant 0 : i32
    %c0_i32_1 = arith.constant 0 : i32
    return %arg0, %c0_i32, %c0_i32_0 : i32, i32, i32
  }
  func.func @transform_1(%arg0: i32) -> (i32, i32) {
    %c0_i32 = arith.constant 0 : i32
    %c0_i32_0 = arith.constant 0 : i32
    %c0_i32_1 = arith.constant 0 : i32
    return %c0_i32, %c0_i32_0 : i32, i32
  }
  func.func @transform_2(%arg0: i32) -> (i32, i32) {
    %c0_i32 = arith.constant 0 : i32
    %c0_i32_0 = arith.constant 0 : i32
    %c0_i32_1 = arith.constant 0 : i32
    return %c0_i32, %c0_i32_0 : i32, i32
  }
  func.func @transform_3(%arg0: i32) -> (i32, i32, i32) {
    %c0_i32 = arith.constant 0 : i32
    %c0_i32_0 = arith.constant 0 : i32
    %c0_i32_1 = arith.constant 0 : i32
    return %arg0, %c0_i32, %c0_i32_0 : i32, i32, i32
  }
}

</mosaic_0001>

<llo_original>
// kernel: unit_tcn_forward.3
$region0: #{unit_tcn_forward.3}
  #allocation0 [shape = 'u32[]', space=smem, size = 0x4, offset = 0x4, fixed_abs, tag = 'smem constant byte address 0x4 - core index']
  #allocation1 [shape = 'u32[144,128]{1,0:T(1,128)}', space=vmem, size = 0x12000, scoped, tag = 'internal scratch']
  %s0 = inlined_call_operand.vmem [shape: f32[2,8,256], index: 0, kind: input, shape index: {}, may-alias: {0,3}]
  %s1 = inlined_call_operand.vmem [shape: f32[8,1], index: 1, kind: input, shape index: {}]
  %s2 = inlined_call_operand.vmem [shape: f32[8,1], index: 2, kind: input, shape index: {}]
  %s3 = inlined_call_operand.vmem [shape: f32[2,8,256], index: 3, kind: output, shape index: {}, may-alias: {0,3}]
  %s4 = sld [smem:[#allocation0]]
  $region45: #{unit_tcn_forward.3} parent=0
    _
  %s6 = ssub.s32 1, %s4
  %s7 = scalar_select 0, %s6, %s4
  loop: start=0, step=1, limit=4
  $region2: #{unit_tcn_forward.3} parent=0 // loop_pre_header
    _
  $region3: #{unit_tcn_forward.3} parent=0 // loop_header
    %s9 = sphi 0, %s13
    %p10 = scmp.ge.s32.totalorder %s9, 4
    %s19 = sphi 0, %s21
    %s22 = sphi 0, %s19
    %s23 = sphi 0, %s22
    %s39 = sphi 0, %s23
    %s43 = sphi 0, %s43
    %s45 = sphi 0, %s43
    %s46 = sphi 0, %s45
    %s60 = sphi 0, %s46
    %s64 = sphi 0, %s64
    %s66 = sphi 0, %s64
    %s67 = sphi 0, %s66
    %s81 = sphi 0, %s67
    %s87 = sphi 0, %s89
    %s90 = sphi 0, %s87
    %s91 = sphi 0, %s90
    %s107 = sphi 0, %s91
  $region4: #{unit_tcn_forward.3} parent=0 // loop_header_branch
    %12 = sbr.rel (%p10) target = $region8
  $region5: #{unit_tcn_forward.3} parent=0 // loop_body
    %s14 = ssub.s32 %s9, 1
    %s15 = ssub.s32 %s9, 2
    %s16 = sadd.s32 %s9, 1
    %s17 = ssub.s32 %s9, %s16
    %p18 = scmp.eq.s32.totalorder %s17, 0
    %s20 = sadd.s32 %s19, 1
    %s21 = scalar_select %p18, %s19, %s20
    %p24 = pneg %p18
    %p25 = scmp.eq.s32.totalorder %s9, 1
    %p26 = por %p24, %p25
    %p27 = scmp.ne.s32.totalorder %s19, %s22
    %p28 = scmp.eq.s32.totalorder %s9, 0
    %p29 = por %p27, %p28
    %p30 = scmp.ne.s32.totalorder %s19, %s22
    %p31 = scmp.eq.s32.totalorder %s14, 1
    %p32 = por %p30, %p31
    %p33 = scmp.ne.s32.totalorder %s22, %s23
    %p34 = scmp.eq.s32.totalorder %s14, 0
    %p35 = por %p33, %p34
    %p36 = scmp.ne.s32.totalorder %s22, %s23
    %p37 = scmp.eq.s32.totalorder %s15, 1
    %p38 = por %p36, %p37
    %p40 = scmp.ne.s32.totalorder %s23, %s39
    %p41 = scmp.eq.s32.totalorder %s15, 0
    %p42 = por %p40, %p41
    %s44 = sadd.s32 %s43, 1
    %p47 = scmp.eq.s32.totalorder %s9, 1
    %p48 = scmp.ne.s32.totalorder %s43, %s45
    %p49 = scmp.eq.s32.totalorder %s9, 0
    %p50 = por %p48, %p49
    %p51 = scmp.ne.s32.totalorder %s43, %s45
    %p52 = scmp.eq.s32.totalorder %s14, 1
    %p53 = por %p51, %p52
    %p54 = scmp.ne.s32.totalorder %s45, %s46
    %p55 = scmp.eq.s32.totalorder %s14, 0
    %p56 = por %p54, %p55
    %p57 = scmp.ne.s32.totalorder %s45, %s46
    %p58 = scmp.eq.s32.totalorder %s15, 1
    %p59 = por %p57, %p58
    %p61 = scmp.ne.s32.totalorder %s46, %s60
    %p62 = scmp.eq.s32.totalorder %s15, 0
    %p63 = por %p61, %p62
    %s65 = sadd.s32 %s64, 1
    %p68 = scmp.eq.s32.totalorder %s9, 1
    %p69 = scmp.ne.s32.totalorder %s64, %s66
    %p70 = scmp.eq.s32.totalorder %s9, 0
    %p71 = por %p69, %p70
    %p72 = scmp.ne.s32.totalorder %s64, %s66
    %p73 = scmp.eq.s32.totalorder %s14, 1
    %p74 = por %p72, %p73
    %p75 = scmp.ne.s32.totalorder %s66, %s67
    %p76 = scmp.eq.s32.totalorder %s14, 0
    %p77 = por %p75, %p76
    %p78 = scmp.ne.s32.totalorder %s66, %s67
    %p79 = scmp.eq.s32.totalorder %s15, 1
    %p80 = por %p78, %p79
    %p82 = scmp.ne.s32.totalorder %s67, %s81
    %p83 = scmp.eq.s32.totalorder %s15, 0
    %p84 = por %p82, %p83
    %s85 = ssub.s32 %s9, %s16
    %p86 = scmp.eq.s32.totalorder %s85, 0
    %s88 = sadd.s32 %s87, 1
    %s89 = scalar_select %p86, %s87, %s88
    %p92 = pneg %p86
    %p93 = scmp.eq.s32.totalorder %s9, 1
    %p94 = por %p92, %p93
    %p95 = scmp.ne.s32.totalorder %s87, %s90
    %p96 = scmp.eq.s32.totalorder %s9, 0
    %p97 = por %p95, %p96
    %p98 = scmp.ne.s32.totalorder %s87, %s90
    %p99 = scmp.eq.s32.totalorder %s14, 1
    %p100 = por %p98, %p99
    %p101 = scmp.ne.s32.totalorder %s90, %s91
    %p102 = scmp.eq.s32.totalorder %s14, 0
    %p103 = por %p101, %p102
    %p104 = scmp.ne.s32.totalorder %s90, %s91
    %p105 = scmp.eq.s32.totalorder %s15, 1
    %p106 = por %p104, %p105
    %p108 = scmp.ne.s32.totalorder %s91, %s107
    %p109 = scmp.eq.s32.totalorder %s15, 0
    %p110 = por %p108, %p109
    %p111 = scmp.le.s32.totalorder 1, %s9
    %p112 = scmp.lt.s32.totalorder %s9, 3
    %p113 = pnand %p111, %p112
    %p114 = pneg %p113
    // Predicated region
    $region9: #{unit_tcn_forward.3} parent=5 // pred_check
      _
    $region10: #{unit_tcn_forward.3} parent=5 // pred_check_branch
      %116 = sbr.rel (%p113) target = $region12
    $region11: #{unit_tcn_forward.3} parent=5 // pred_region
      %s117 = ssub.s32 %s9, 1
      // Predicated region
      $region13: #{unit_tcn_forward.3} parent=11 // pred_check
        %p118 = pneg %p56
      $region14: #{unit_tcn_forward.3} parent=11 // pred_check_branch
        %120 = sbr.rel (%p118) target = $region16
      $region15: #{unit_tcn_forward.3} parent=11 // pred_region
        _
      $region16: #{unit_tcn_forward.3} parent=11 // pred_fallthru
        _
      // Predicated region
      $region17: #{unit_tcn_forward.3} parent=11 // pred_check
        %p121 = pneg %p77
      $region18: #{unit_tcn_forward.3} parent=11 // pred_check_branch
        %123 = sbr.rel (%p121) target = $region20
      $region19: #{unit_tcn_forward.3} parent=11 // pred_region
        _
      $region20: #{unit_tcn_forward.3} parent=11 // pred_fallthru
        _
    $region12: #{unit_tcn_forward.3} parent=5 // pred_fallthru
      _
    %p124 = scmp.lt.s32.totalorder %s9, 2
    // Predicated region
    $region21: #{unit_tcn_forward.3} parent=5 // pred_check
      %p125 = pneg %p124
    $region22: #{unit_tcn_forward.3} parent=5 // pred_check_branch
      %127 = sbr.rel (%p125) target = $region24
    $region23: #{unit_tcn_forward.3} parent=5 // pred_region
      // Predicated region
      $region25: #{unit_tcn_forward.3} parent=23 // pred_check
        %p128 = pneg %p29
      $region26: #{unit_tcn_forward.3} parent=23 // pred_check_branch
        %130 = sbr.rel (%p128) target = $region28
      $region27: #{unit_tcn_forward.3} parent=23 // pred_region
        %p131 = scmp.lt.s32.totalorder %s9, 1
        %s132 = scalar_select %p131, %s9, 1
        %s133 = smul.addr %s132, 2
        %s134 = smul.addr %s133, 8
        %s135 = scalar_lea.vmem %s0, %s134
      $region28: #{unit_tcn_forward.3} parent=23 // pred_fallthru
        _
    $region24: #{unit_tcn_forward.3} parent=5 // pred_fallthru
      _
    %p136 = scmp.le.s32.totalorder 1, %s9
    %p137 = scmp.lt.s32.totalorder %s9, 3
    %p138 = pnand %p136, %p137
    %p139 = pneg %p138
    // Predicated region
    $region29: #{unit_tcn_forward.3} parent=5 // pred_check
      _
    $region30: #{unit_tcn_forward.3} parent=5 // pred_check_branch
      %141 = sbr.rel (%p138) target = $region32
    $region31: #{unit_tcn_forward.3} parent=5 // pred_region
      %s142 = ssub.s32 %s9, 1
      %p143 = scmp.lt.s32.totalorder %s14, 1
      %s144 = scalar_select %p143, %s14, 1
      %s145 = smul.addr %s144, 2
      %s146 = smul.addr %s145, 8
      %s147 = scalar_lea.vmem %s0, %s146
      %p148 = pneg %p35
      %p149 = pneg %p32
      %p150 = pneg %p56
      %p151 = pneg %p53
      %p152 = pneg %p77
      %p153 = pneg %p74
      %p154 = pneg %p103
      %p155 = pneg %p100
      %p156 = scmp.lt.s32.totalorder %s14, 1
      %s157 = scalar_select %p156, %s14, 1
      %s158 = smul.addr %s157, 2
      %s159 = smul.addr %s158, 8
      %s160 = scalar_lea.vmem %s3, %s159
      %p161 = scmp.lt.s32.totalorder %s14, 1
      %s162 = scalar_select %p161, %s14, 1
      %s163 = smul.addr %s162, 2
      %s164 = smul.addr %s163, 8
      %s165 = scalar_lea.vmem %s0, %s164
      %p166 = scmp.lt.s32.totalorder %s14, 1
      %s167 = scalar_select %p166, %s14, 1
      %s168 = smul.addr %s167, 2
      %s169 = smul.addr %s168, 8
      %s170 = scalar_lea.vmem %s3, %s169
      %v171 = vld [vmem:[%s165] sm:$0xff]
      %v172 = vld [vmem:[%s165 + $0x8] sm:$0xff]
      %v173 = vld [vmem:[%s1] sm:$0xff]
      %175 = vset.pattern.permute.xlu0 0
      %176 = vperm.xlu0 %175, %v173
      %v177 = vpop.permute.xlu0 %176
      %v179 = vmul.f32 %v171, %v177
      %v180 = vmul.f32 %v172, %v177
      %v181 = vld [vmem:[%s2] sm:$0xff]
      %183 = vset.pattern.permute.xlu0 0
      %184 = vperm.xlu0 %183, %v181
      %v185 = vpop.permute.xlu0 %184
      %v187 = vadd.f32 %v179, %v185
      %v188 = vadd.f32 %v180, %v185
      %189 = vst [vmem:[%s170] sm:$0xff] %v187
      %190 = vst [vmem:[%s170 + $0x8] sm:$0xff] %v188
      %p191 = scmp.lt.s32.totalorder %s14, 1
      %s192 = scalar_select %p191, %s14, 1
      %s193 = smul.addr %s192, 2
      %s194 = smul.addr %s193, 8
      %s195 = scalar_lea.vmem %s3, %s194
      // Predicated region
      $region33: #{unit_tcn_forward.3} parent=31 // pred_check
        %p196 = pneg %p100
      $region34: #{unit_tcn_forward.3} parent=31 // pred_check_branch
        %198 = sbr.rel (%p196) target = $region36
      $region35: #{unit_tcn_forward.3} parent=31 // pred_region
        _
      $region36: #{unit_tcn_forward.3} parent=31 // pred_fallthru
        _
    $region32: #{unit_tcn_forward.3} parent=5 // pred_fallthru
      _
    %p199 = scmp.le.s32.totalorder 2, %s9
    // Predicated region
    $region37: #{unit_tcn_forward.3} parent=5 // pred_check
      %p200 = pneg %p199
    $region38: #{unit_tcn_forward.3} parent=5 // pred_check_branch
      %202 = sbr.rel (%p200) target = $region40
    $region39: #{unit_tcn_forward.3} parent=5 // pred_region
      %s203 = ssub.s32 %s9, 2
      // Predicated region
      $region41: #{unit_tcn_forward.3} parent=39 // pred_check
        %p204 = pneg %p106
      $region42: #{unit_tcn_forward.3} parent=39 // pred_check_branch
        %206 = sbr.rel (%p204) target = $region44
      $region43: #{unit_tcn_forward.3} parent=39 // pred_region
        %p207 = scmp.lt.s32.totalorder %s15, 1
        %s208 = scalar_select %p207, %s15, 1
        %s209 = smul.addr %s208, 2
        %s210 = smul.addr %s209, 8
        %s211 = scalar_lea.vmem %s3, %s210
      $region44: #{unit_tcn_forward.3} parent=39 // pred_fallthru
        _
    $region40: #{unit_tcn_forward.3} parent=5 // pred_fallthru
      _
  $region6: #{unit_tcn_forward.3} parent=0 // loop_footer
    %s13 = sadd.s32 1, %s9
  $region7: #{unit_tcn_forward.3} parent=0 // loop_footer_branch
    %8 = sbr.rel target = $region3
  $region8: #{unit_tcn_forward.3} parent=0 // loop_exit
    _

// kernel: unit_tcn_forward.2
$region0: #{unit_tcn_forward.2}
  #allocation0 [shape = 'u32[]', space=smem, size = 0x4, offset = 0x4, fixed_abs, tag = 'smem constant byte address 0x4 - core index']
  #allocation1 [shape = 'u32[144,128]{1,0:T(1,128)}', space=vmem, size = 0x12000, scoped, tag = 'internal scratch']
  %s0 = inlined_call_operand.vmem [shape: f32[2,4,384], index: 0, kind: input, shape index: {}]
  %s1 = inlined_call_operand.vmem [shape: f32[9,8,4], index: 1, kind: input, shape index: {}]
  %s2 = inlined_call_operand.vmem [shape: f32[2,8,256], index: 2, kind: output, shape index: {0}]
  %s3 = inlined_call_operand.vmem [shape: f32[2,2,8], index: 3, kind: output, shape index: {1}]
  %4 = xla_tuple %s2, %s3
  %s5 = sld [smem:[#allocation0]]
  $region53: #{unit_tcn_forward.2} parent=0
    _
  %s7 = ssub.s32 1, %s5
  %s8 = scalar_select 0, %s7, %s5
  loop: start=0, step=1, limit=4
  $region2: #{unit_tcn_forward.2} parent=0 // loop_pre_header
    _
  $region3: #{unit_tcn_forward.2} parent=0 // loop_header
    %s10 = sphi 0, %s14
    %p11 = scmp.ge.s32.totalorder %s10, 4
    %s17 = sphi 0, %s29
    %s18 = sphi 0, %s25
    %s19 = sphi 0, %s17
    %s20 = sphi 0, %s18
    %s21 = sphi 0, %s19
    %s22 = sphi 0, %s20
    %s32 = sphi 0, %s34
    %s35 = sphi 0, %s32
    %s36 = sphi 0, %s35
    %s52 = sphi 0, %s36
    %s56 = sphi 0, %s56
    %s58 = sphi 0, %s56
    %s59 = sphi 0, %s58
    %s73 = sphi 0, %s59
    %s81 = sphi 0, %s83
    %s84 = sphi 0, %s81
    %s85 = sphi 0, %s84
    %s101 = sphi 0, %s85
    %s107 = sphi 0, %s109
    %s110 = sphi 0, %s107
    %s111 = sphi 0, %s110
    %s127 = sphi 0, %s111
  $region4: #{unit_tcn_forward.2} parent=0 // loop_header_branch
    %13 = sbr.rel (%p11) target = $region8
  $region5: #{unit_tcn_forward.2} parent=0 // loop_body
    %s15 = ssub.s32 %s10, 1
    %s16 = ssub.s32 %s10, 2
    %s23 = sadd.s32 1, %s18
    %p24 = scmp.ge.s32.totalorder %s23, 1
    %s25 = scalar_select %p24, 0, %s23
    %s26 = sadd.s32 1, %s17
    %s27 = scalar_select %p24, %s26, %s17
    %p28 = scmp.ge.s32.totalorder %s27, 2
    %s29 = scalar_select %p28, 0, %s27
    %s30 = ssub.s32 %s17, %s29
    %p31 = scmp.eq.s32.totalorder %s30, 0
    %s33 = sadd.s32 %s32, 1
    %s34 = scalar_select %p31, %s32, %s33
    %p37 = pneg %p31
    %p38 = scmp.eq.s32.totalorder %s10, 1
    %p39 = por %p37, %p38
    %p40 = scmp.ne.s32.totalorder %s32, %s35
    %p41 = scmp.eq.s32.totalorder %s10, 0
    %p42 = por %p40, %p41
    %p43 = scmp.ne.s32.totalorder %s32, %s35
    %p44 = scmp.eq.s32.totalorder %s15, 1
    %p45 = por %p43, %p44
    %p46 = scmp.ne.s32.totalorder %s35, %s36
    %p47 = scmp.eq.s32.totalorder %s15, 0
    %p48 = por %p46, %p47
    %p49 = scmp.ne.s32.totalorder %s35, %s36
    %p50 = scmp.eq.s32.totalorder %s16, 1
    %p51 = por %p49, %p50
    %p53 = scmp.ne.s32.totalorder %s36, %s52
    %p54 = scmp.eq.s32.totalorder %s16, 0
    %p55 = por %p53, %p54
    %s57 = sadd.s32 %s56, 1
    %p60 = scmp.eq.s32.totalorder %s10, 1
    %p61 = scmp.ne.s32.totalorder %s56, %s58
    %p62 = scmp.eq.s32.totalorder %s10, 0
    %p63 = por %p61, %p62
    %p64 = scmp.ne.s32.totalorder %s56, %s58
    %p65 = scmp.eq.s32.totalorder %s15, 1
    %p66 = por %p64, %p65
    %p67 = scmp.ne.s32.totalorder %s58, %s59
    %p68 = scmp.eq.s32.totalorder %s15, 0
    %p69 = por %p67, %p68
    %p70 = scmp.ne.s32.totalorder %s58, %s59
    %p71 = scmp.eq.s32.totalorder %s16, 1
    %p72 = por %p70, %p71
    %p74 = scmp.ne.s32.totalorder %s59, %s73
    %p75 = scmp.eq.s32.totalorder %s16, 0
    %p76 = por %p74, %p75
    %s77 = ssub.s32 %s17, %s29
    %s78 = ssub.s32 %s18, %s25
    %s79 = sor.u32 %s77, %s78
    %p80 = scmp.eq.s32.totalorder %s79, 0
    %s82 = sadd.s32 %s81, 1
    %s83 = scalar_select %p80, %s81, %s82
    %p86 = pneg %p80
    %p87 = scmp.eq.s32.totalorder %s10, 1
    %p88 = por %p86, %p87
    %p89 = scmp.ne.s32.totalorder %s81, %s84
    %p90 = scmp.eq.s32.totalorder %s10, 0
    %p91 = por %p89, %p90
    %p92 = scmp.ne.s32.totalorder %s81, %s84
    %p93 = scmp.eq.s32.totalorder %s15, 1
    %p94 = por %p92, %p93
    %p95 = scmp.ne.s32.totalorder %s84, %s85
    %p96 = scmp.eq.s32.totalorder %s15, 0
    %p97 = por %p95, %p96
    %p98 = scmp.ne.s32.totalorder %s84, %s85
    %p99 = scmp.eq.s32.totalorder %s16, 1
    %p100 = por %p98, %p99
    %p102 = scmp.ne.s32.totalorder %s85, %s101
    %p103 = scmp.eq.s32.totalorder %s16, 0
    %p104 = por %p102, %p103
    %s105 = ssub.s32 %s17, %s29
    %p106 = scmp.eq.s32.totalorder %s105, 0
    %s108 = sadd.s32 %s107, 1
    %s109 = scalar_select %p106, %s107, %s108
    %p112 = pneg %p106
    %p113 = scmp.eq.s32.totalorder %s10, 1
    %p114 = por %p112, %p113
    %p115 = scmp.ne.s32.totalorder %s107, %s110
    %p116 = scmp.eq.s32.totalorder %s10, 0
    %p117 = por %p115, %p116
    %p118 = scmp.ne.s32.totalorder %s107, %s110
    %p119 = scmp.eq.s32.totalorder %s15, 1
    %p120 = por %p118, %p119
    %p121 = scmp.ne.s32.totalorder %s110, %s111
    %p122 = scmp.eq.s32.totalorder %s15, 0
    %p123 = por %p121, %p122
    %p124 = scmp.ne.s32.totalorder %s110, %s111
    %p125 = scmp.eq.s32.totalorder %s16, 1
    %p126 = por %p124, %p125
    %p128 = scmp.ne.s32.totalorder %s111, %s127
    %p129 = scmp.eq.s32.totalorder %s16, 0
    %p130 = por %p128, %p129
    %p131 = scmp.le.s32.totalorder 1, %s10
    %p132 = scmp.lt.s32.totalorder %s10, 3
    %p133 = pnand %p131, %p132
    %p134 = pneg %p133
    // Predicated region
    $region9: #{unit_tcn_forward.2} parent=5 // pred_check
      _
    $region10: #{unit_tcn_forward.2} parent=5 // pred_check_branch
      %136 = sbr.rel (%p133) target = $region12
    $region11: #{unit_tcn_forward.2} parent=5 // pred_region
      %s137 = ssub.s32 %s10, 1
      // Predicated region
      $region13: #{unit_tcn_forward.2} parent=11 // pred_check
        %p138 = pneg %p69
      $region14: #{unit_tcn_forward.2} parent=11 // pred_check_branch
        %140 = sbr.rel (%p138) target = $region16
      $region15: #{unit_tcn_forward.2} parent=11 // pred_region
        _
      $region16: #{unit_tcn_forward.2} parent=11 // pred_fallthru
        _
    $region12: #{unit_tcn_forward.2} parent=5 // pred_fallthru
      _
    %p141 = scmp.lt.s32.totalorder %s10, 2
    // Predicated region
    $region17: #{unit_tcn_forward.2} parent=5 // pred_check
      %p142 = pneg %p141
    $region18: #{unit_tcn_forward.2} parent=5 // pred_check_branch
      %144 = sbr.rel (%p142) target = $region20
    $region19: #{unit_tcn_forward.2} parent=5 // pred_region
      // Predicated region
      $region21: #{unit_tcn_forward.2} parent=19 // pred_check
        %p145 = pneg %p42
      $region22: #{unit_tcn_forward.2} parent=19 // pred_check_branch
        %147 = sbr.rel (%p145) target = $region24
      $region23: #{unit_tcn_forward.2} parent=19 // pred_region
        %p148 = scmp.lt.s32.totalorder %s17, 1
        %s149 = scalar_select %p148, %s17, 1
        %s150 = smul.addr %s149, 3
        %s151 = smul.addr %s150, 4
        %s152 = scalar_lea.vmem %s0, %s151
      $region24: #{unit_tcn_forward.2} parent=19 // pred_fallthru
        _
    $region20: #{unit_tcn_forward.2} parent=5 // pred_fallthru
      _
    %p153 = scmp.le.s32.totalorder 1, %s10
    %p154 = scmp.lt.s32.totalorder %s10, 3
    %p155 = pnand %p153, %p154
    %p156 = pneg %p155
    // Predicated region
    $region25: #{unit_tcn_forward.2} parent=5 // pred_check
      _
    $region26: #{unit_tcn_forward.2} parent=5 // pred_check_branch
      %158 = sbr.rel (%p155) target = $region28
    $region27: #{unit_tcn_forward.2} parent=5 // pred_region
      %s159 = ssub.s32 %s10, 1
      %p160 = scmp.lt.s32.totalorder %s19, 1
      %s161 = scalar_select %p160, %s19, 1
      %s162 = smul.addr %s161, 3
      %s163 = smul.addr %s162, 4
      %s164 = scalar_lea.vmem %s0, %s163
      %p165 = pneg %p48
      %p166 = pneg %p45
      %p167 = pneg %p69
      %p168 = pneg %p66
      %p169 = pneg %p97
      %p170 = pneg %p94
      %s171 = smul.u32 2, %s20
      %p172 = scmp.lt.s32.totalorder %s19, 1
      %s173 = scalar_select %p172, %s19, 1
      %p174 = scmp.lt.s32.totalorder %s171, 1
      %s175 = scalar_select %p174, %s171, 1
      %s176 = smul.addr %s173, 2
      %s177 = sadd.s32 %s175, %s176
      %s178 = smul.addr %s177, 8
      %s179 = scalar_lea.vmem %s2, %s178
      %p180 = pneg %p123
      %p181 = pneg %p120
      %p182 = scmp.lt.s32.totalorder %s19, 1
      %s183 = scalar_select %p182, %s19, 1
      %s184 = smul.addr %s183, 2
      %s185 = scalar_lea.vmem %s3, %s184
      %p186 = scmp.lt.s32.totalorder %s19, 1
      %s187 = scalar_select %p186, %s19, 1
      %s188 = smul.addr %s187, 3
      %s189 = smul.addr %s188, 4
      %s190 = scalar_lea.vmem %s0, %s189
      %s191 = smul.u32 2, %s20
      %p192 = scmp.lt.s32.totalorder %s19, 1
      %s193 = scalar_select %p192, %s19, 1
      %p194 = scmp.lt.s32.totalorder %s191, 1
      %s195 = scalar_select %p194, %s191, 1
      %s196 = smul.addr %s193, 2
      %s197 = sadd.s32 %s195, %s196
      %s198 = smul.addr %s197, 8
      %s199 = scalar_lea.vmem %s2, %s198
      %s200 = smul.u32 2, %s20
      %p201 = scmp.lt.s32.totalorder %s19, 1
      %s202 = scalar_select %p201, %s19, 1
      %s203 = smul.addr %s202, 2
      %s204 = scalar_lea.vmem %s3, %s203
      %v205 = vld [vmem:[%s190] sm:$0xff]
      %v206 = vld [vmem:[%s190 + $0x8] sm:$0xf]
      %v207 = vld [vmem:[%s1] sm:$0xff]
      %s208 = scalar_lea.vmem %s1, 8
      %v209 = vld [vmem:[%s208] sm:$0xff]
      %v212 = vcombine.high %v205, %v205
      %213 = vrot.lane.b32.xlu0 %v205, 112
      %v214 = vpop.permute.xlu0 %213
      %215 = vrot.lane.b32.xlu0 %v212, 112
      %v216 = vpop.permute.xlu0 %215
      %217 = vrot.lane.b32.xlu0 %v206, 112
      %v218 = vpop.permute.xlu0 %217
      %vm219 = vcmask 916480
      %v220 = vsel %vm219, %v214, %v216
      %v221 = vsel %vm219, %v216, %v218
      %vm222 = vcmask 31744
      %v224 = vsel %vm222, %v209, 0
      %vm226 = vcmask 1043456
      %v227 = vsel %vm226, %v220, 0
      %v229 = vsel %vm226, %v221, 0
      %231 = vmatprep.subr.mxu0 %v229
      %232 = vmatpush1.msra.mxu0 %v227
      %233 = vmatprep.subr.mxu0 0.0
      %234 = vmatpush1.msra.mxu0 0.0
      %235 = vmatprep.subr.mxu0 0.0
      %236 = vmatpush1.msra.mxu0 0.0
      %237 = vmatprep.subr.mxu0 0.0
      %238 = vmatpush1.msra.mxu0 0.0
      %239 = vmatprep.subr.mxu0 0.0
      %240 = vmatpush1.msra.mxu0 0.0
      %241 = vmatprep.subr.mxu0 0.0
      %242 = vmatpush1.msra.mxu0 0.0
      %243 = vmatprep.subr.mxu0 0.0
      %244 = vmatpush1.msra.mxu0 0.0
      %245 = vmatprep.subr.mxu0 0.0
      %246 = vmatpush1.msra.mxu0 0.0
      %247 = vmatprep.subr.mxu0 0.0
      %248 = vmatpush1.msra.mxu0 0.0
      %249 = vmatprep.subr.mxu0 0.0
      %250 = vmatpush1.msra.mxu0 0.0
      %251 = vmatprep.subr.mxu0 0.0
      %252 = vmatpush1.msra.mxu0 0.0
      %253 = vmatprep.subr.mxu0 0.0
      %254 = vmatpush1.msra.mxu0 0.0
      %255 = vmatprep.subr.mxu0 0.0
      %256 = vmatpush1.msra.mxu0 0.0
      %257 = vmatprep.subr.mxu0 0.0
      %258 = vmatpush1.msra.mxu0 0.0
      %259 = vmatprep.subr.mxu0 0.0
      %260 = vmatpush1.msra.mxu0 0.0
      %261 = vmatprep.subr.mxu0 0.0
      %262 = vmatpush1.msra.mxu0 0.0
      %263 = vmatprep.subr.mxu0 0.0
      %264 = vmatpush1.msra.mxu0 0.0
      %265 = vmatprep.subr.mxu0 0.0
      %266 = vmatpush1.msra.mxu0 0.0
      %267 = vmatprep.subr.mxu0 0.0
      %268 = vmatpush1.msra.mxu0 0.0
      %269 = vmatprep.subr.mxu0 0.0
      %270 = vmatpush1.msra.mxu0 0.0
      %271 = vmatprep.subr.mxu0 0.0
      %272 = vmatpush1.msra.mxu0 0.0
      %273 = vmatprep.subr.mxu0 0.0
      %274 = vmatpush1.msra.mxu0 0.0
      %275 = vmatprep.subr.mxu0 0.0
      %276 = vmatpush1.msra.mxu0 0.0
      %277 = vmatprep.subr.mxu0 0.0
      %278 = vmatpush1.msra.mxu0 0.0
      %279 = vmatprep.subr.mxu0 0.0
      %280 = vmatpush1.msra.mxu0 0.0
      %281 = vmatprep.subr.mxu0 0.0
      %282 = vmatpush1.msra.mxu0 0.0
      %283 = vmatprep.subr.mxu0 0.0
      %284 = vmatpush1.msra.mxu0 0.0
      %285 = vmatprep.subr.mxu0 0.0
      %286 = vmatpush1.msra.mxu0 0.0
      %287 = vmatprep.subr.mxu0 0.0
      %288 = vmatpush1.msra.mxu0 0.0
      %289 = vmatprep.subr.mxu0 0.0
      %290 = vmatpush1.msra.mxu0 0.0
      %291 = vmatprep.subr.mxu0 0.0
      %292 = vmatpush1.msra.mxu0 0.0
      %293 = vmatprep.subr.mxu0 0.0
      %294 = vmatpush1.msra.mxu0 0.0
      %295 = vmatprep.mubr.f32.mxu0 0.0
      %296 = vmatmul.mubr.f32.gmra.mrb[0].mxu0 %v224
      %v297 = vpop.f32.mrb[0].mxu0
      %v298 = vadd.f32 0.0, %v297
      %v299 = vpop.f32.mrb[0].mxu0
      %v300 = vadd.f32 0.0, %v299
      %301 = vdwg.mxu0
      %v303 = vsel %vm222, %v207, 0
      %v305 = vsel %vm226, %v205, 0
      %v307 = vsel %vm226, %v212, 0
      %309 = vmatprep.subr.mxu0 %v307
      %310 = vmatpush1.msra.mxu0 %v305
      %311 = vmatprep.subr.mxu0 0.0
      %312 = vmatpush1.msra.mxu0 0.0
      %313 = vmatprep.subr.mxu0 0.0
      %314 = vmatpush1.msra.mxu0 0.0
      %315 = vmatprep.subr.mxu0 0.0
      %316 = vmatpush1.msra.mxu0 0.0
      %317 = vmatprep.subr.mxu0 0.0
      %318 = vmatpush1.msra.mxu0 0.0
      %319 = vmatprep.subr.mxu0 0.0
      %320 = vmatpush1.msra.mxu0 0.0
      %321 = vmatprep.subr.mxu0 0.0
      %322 = vmatpush1.msra.mxu0 0.0
      %323 = vmatprep.subr.mxu0 0.0
      %324 = vmatpush1.msra.mxu0 0.0
      %325 = vmatprep.subr.mxu0 0.0
      %326 = vmatpush1.msra.mxu0 0.0
      %327 = vmatprep.subr.mxu0 0.0
      %328 = vmatpush1.msra.mxu0 0.0
      %329 = vmatprep.subr.mxu0 0.0
      %330 = vmatpush1.msra.mxu0 0.0
      %331 = vmatprep.subr.mxu0 0.0
      %332 = vmatpush1.msra.mxu0 0.0
      %333 = vmatprep.subr.mxu0 0.0
      %334 = vmatpush1.msra.mxu0 0.0
      %335 = vmatprep.subr.mxu0 0.0
      %336 = vmatpush1.msra.mxu0 0.0
      %337 = vmatprep.subr.mxu0 0.0
      %338 = vmatpush1.msra.mxu0 0.0
      %339 = vmatprep.subr.mxu0 0.0
      %340 = vmatpush1.msra.mxu0 0.0
      %341 = vmatprep.subr.mxu0 0.0
      %342 = vmatpush1.msra.mxu0 0.0
      %343 = vmatprep.subr.mxu0 0.0
      %344 = vmatpush1.msra.mxu0 0.0
      %345 = vmatprep.subr.mxu0 0.0
      %346 = vmatpush1.msra.mxu0 0.0
      %347 = vmatprep.subr.mxu0 0.0
      %348 = vmatpush1.msra.mxu0 0.0
      %349 = vmatprep.subr.mxu0 0.0
      %350 = vmatpush1.msra.mxu0 0.0
      %351 = vmatprep.subr.mxu0 0.0
      %352 = vmatpush1.msra.mxu0 0.0
      %353 = vmatprep.subr.mxu0 0.0
      %354 = vmatpush1.msra.mxu0 0.0
      %355 = vmatprep.subr.mxu0 0.0
      %356 = vmatpush1.msra.mxu0 0.0
      %357 = vmatprep.subr.mxu0 0.0
      %358 = vmatpush1.msra.mxu0 0.0
      %359 = vmatprep.subr.mxu0 0.0
      %360 = vmatpush1.msra.mxu0 0.0
      %361 = vmatprep.subr.mxu0 0.0
      %362 = vmatpush1.msra.mxu0 0.0
      %363 = vmatprep.subr.mxu0 0.0
      %364 = vmatpush1.msra.mxu0 0.0
      %365 = vmatprep.subr.mxu0 0.0
      %366 = vmatpush1.msra.mxu0 0.0
      %367 = vmatprep.subr.mxu0 0.0
      %368 = vmatpush1.msra.mxu0 0.0
      %369 = vmatprep.subr.mxu0 0.0
      %370 = vmatpush1.msra.mxu0 0.0
      %371 = vmatprep.subr.mxu0 0.0
      %372 = vmatpush1.msra.mxu0 0.0
      %373 = vmatprep.mubr.f32.mxu0 0.0
      %374 = vmatmul.mubr.f32.gmra.mrb[0].mxu0 %v303
      %v375 = vpop.f32.mrb[0].mxu0
      %v376 = vadd.f32 %v298, %v375
      %v377 = vpop.f32.mrb[0].mxu0
      %v378 = vadd.f32 %v300, %v377
      %379 = vdwg.mxu0
      %s380 = scalar_lea.vmem %s1, 16
      %v381 = vld [vmem:[%s380] sm:$0xff]
      %382 = vrot.lane.b32.xlu0 %v205, 96
      %v383 = vpop.permute.xlu0 %382
      %384 = vrot.lane.b32.xlu0 %v212, 96
      %v385 = vpop.permute.xlu0 %384
      %386 = vrot.lane.b32.xlu0 %v206, 96
      %v387 = vpop.permute.xlu0 %386
      %vm388 = vcmask 785408
      %v389 = vsel %vm388, %v383, %v385
      %v390 = vsel %vm388, %v385, %v387
      %v392 = vsel %vm222, %v381, 0
      %v394 = vsel %vm226, %v389, 0
      %v396 = vsel %vm226, %v390, 0
      %398 = vmatprep.subr.mxu0 %v396
      %399 = vmatpush1.msra.mxu0 %v394
      %400 = vmatprep.subr.mxu0 0.0
      %401 = vmatpush1.msra.mxu0 0.0
      %402 = vmatprep.subr.mxu0 0.0
      %403 = vmatpush1.msra.mxu0 0.0
      %404 = vmatprep.subr.mxu0 0.0
      %405 = vmatpush1.msra.mxu0 0.0
      %406 = vmatprep.subr.mxu0 0.0
      %407 = vmatpush1.msra.mxu0 0.0
      %408 = vmatprep.subr.mxu0 0.0
      %409 = vmatpush1.msra.mxu0 0.0
      %410 = vmatprep.subr.mxu0 0.0
      %411 = vmatpush1.msra.mxu0 0.0
      %412 = vmatprep.subr.mxu0 0.0
      %413 = vmatpush1.msra.mxu0 0.0
      %414 = vmatprep.subr.mxu0 0.0
      %415 = vmatpush1.msra.mxu0 0.0
      %416 = vmatprep.subr.mxu0 0.0
      %417 = vmatpush1.msra.mxu0 0.0
      %418 = vmatprep.subr.mxu0 0.0
      %419 = vmatpush1.msra.mxu0 0.0
      %420 = vmatprep.subr.mxu0 0.0
      %421 = vmatpush1.msra.mxu0 0.0
      %422 = vmatprep.subr.mxu0 0.0
      %423 = vmatpush1.msra.mxu0 0.0
      %424 = vmatprep.subr.mxu0 0.0
      %425 = vmatpush1.msra.mxu0 0.0
      %426 = vmatprep.subr.mxu0 0.0
      %427 = vmatpush1.msra.mxu0 0.0
      %428 = vmatprep.subr.mxu0 0.0
      %429 = vmatpush1.msra.mxu0 0.0
      %430 = vmatprep.subr.mxu0 0.0
      %431 = vmatpush1.msra.mxu0 0.0
      %432 = vmatprep.subr.mxu0 0.0
      %433 = vmatpush1.msra.mxu0 0.0
      %434 = vmatprep.subr.mxu0 0.0
      %435 = vmatpush1.msra.mxu0 0.0
      %436 = vmatprep.subr.mxu0 0.0
      %437 = vmatpush1.msra.mxu0 0.0
      %438 = vmatprep.subr.mxu0 0.0
      %439 = vmatpush1.msra.mxu0 0.0
      %440 = vmatprep.subr.mxu0 0.0
      %441 = vmatpush1.msra.mxu0 0.0
      %442 = vmatprep.subr.mxu0 0.0
      %443 = vmatpush1.msra.mxu0 0.0
      %444 = vmatprep.subr.mxu0 0.0
      %445 = vmatpush1.msra.mxu0 0.0
      %446 = vmatprep.subr.mxu0 0.0
      %447 = vmatpush1.msra.mxu0 0.0
      %448 = vmatprep.subr.mxu0 0.0
      %449 = vmatpush1.msra.mxu0 0.0
      %450 = vmatprep.subr.mxu0 0.0
      %451 = vmatpush1.msra.mxu0 0.0
      %452 = vmatprep.subr.mxu0 0.0
      %453 = vmatpush1.msra.mxu0 0.0
      %454 = vmatprep.subr.mxu0 0.0
      %455 = vmatpush1.msra.mxu0 0.0
      %456 = vmatprep.subr.mxu0 0.0
      %457 = vmatpush1.msra.mxu0 0.0
      %458 = vmatprep.subr.mxu0 0.0
      %459 = vmatpush1.msra.mxu0 0.0
      %460 = vmatprep.subr.mxu0 0.0
      %461 = vmatpush1.msra.mxu0 0.0
      %462 = vmatprep.mubr.f32.mxu0 0.0
      %463 = vmatmul.mubr.f32.gmra.mrb[0].mxu0 %v392
      %v464 = vpop.f32.mrb[0].mxu0
      %v465 = vadd.f32 0.0, %v464
      %v466 = vpop.f32.mrb[0].mxu0
      %v467 = vadd.f32 0.0, %v466
      %468 = vdwg.mxu0
      %v469 = vadd.f32 %v376, %v465
      %v470 = vadd.f32 %v378, %v467
      %s471 = scalar_lea.vmem %s1, 24
      %v472 = vld [vmem:[%s471] sm:$0xff]
      %473 = vrot.lane.b32.xlu0 %v205, 80
      %v474 = vpop.permute.xlu0 %473
      %475 = vrot.lane.b32.xlu0 %v212, 80
      %v476 = vpop.permute.xlu0 %475
      %477 = vrot.lane.b32.xlu0 %v206, 80
      %v478 = vpop.permute.xlu0 %477
      %vm479 = vcmask 654336
      %v480 = vsel %vm479, %v474, %v476
      %v481 = vsel %vm479, %v476, %v478
      %v483 = vsel %vm222, %v472, 0
      %v485 = vsel %vm226, %v480, 0
      %v487 = vsel %vm226, %v481, 0
      %489 = vmatprep.subr.mxu0 %v487
      %490 = vmatpush1.msra.mxu0 %v485
      %491 = vmatprep.subr.mxu0 0.0
      %492 = vmatpush1.msra.mxu0 0.0
      %493 = vmatprep.subr.mxu0 0.0
      %494 = vmatpush1.msra.mxu0 0.0
      %495 = vmatprep.subr.mxu0 0.0
      %496 = vmatpush1.msra.mxu0 0.0
      %497 = vmatprep.subr.mxu0 0.0
      %498 = vmatpush1.msra.mxu0 0.0
      %499 = vmatprep.subr.mxu0 0.0
      %500 = vmatpush1.msra.mxu0 0.0
      %501 = vmatprep.subr.mxu0 0.0
      %502 = vmatpush1.msra.mxu0 0.0
      %503 = vmatprep.subr.mxu0 0.0
      %504 = vmatpush1.msra.mxu0 0.0
      %505 = vmatprep.subr.mxu0 0.0
      %506 = vmatpush1.msra.mxu0 0.0
      %507 = vmatprep.subr.mxu0 0.0
      %508 = vmatpush1.msra.mxu0 0.0
      %509 = vmatprep.subr.mxu0 0.0
      %510 = vmatpush1.msra.mxu0 0.0
      %511 = vmatprep.subr.mxu0 0.0
      %512 = vmatpush1.msra.mxu0 0.0
      %513 = vmatprep.subr.mxu0 0.0
      %514 = vmatpush1.msra.mxu0 0.0
      %515 = vmatprep.subr.mxu0 0.0
      %516 = vmatpush1.msra.mxu0 0.0
      %517 = vmatprep.subr.mxu0 0.0
      %518 = vmatpush1.msra.mxu0 0.0
      %519 = vmatprep.subr.mxu0 0.0
      %520 = vmatpush1.msra.mxu0 0.0
      %521 = vmatprep.subr.mxu0 0.0
      %522 = vmatpush1.msra.mxu0 0.0
      %523 = vmatprep.subr.mxu0 0.0
      %524 = vmatpush1.msra.mxu0 0.0
      %525 = vmatprep.subr.mxu0 0.0
      %526 = vmatpush1.msra.mxu0 0.0
      %527 = vmatprep.subr.mxu0 0.0
      %528 = vmatpush1.msra.mxu0 0.0
      %529 = vmatprep.subr.mxu0 0.0
      %530 = vmatpush1.msra.mxu0 0.0
      %531 = vmatprep.subr.mxu0 0.0
      %532 = vmatpush1.msra.mxu0 0.0
      %533 = vmatprep.subr.mxu0 0.0
      %534 = vmatpush1.msra.mxu0 0.0
      %535 = vmatprep.subr.mxu0 0.0
      %536 = vmatpush1.msra.mxu0 0.0
      %537 = vmatprep.subr.mxu0 0.0
      %538 = vmatpush1.msra.mxu0 0.0
      %539 = vmatprep.subr.mxu0 0.0
      %540 = vmatpush1.msra.mxu0 0.0
      %541 = vmatprep.subr.mxu0 0.0
      %542 = vmatpush1.msra.mxu0 0.0
      %543 = vmatprep.subr.mxu0 0.0
      %544 = vmatpush1.msra.mxu0 0.0
      %545 = vmatprep.subr.mxu0 0.0
      %546 = vmatpush1.msra.mxu0 0.0
      %547 = vmatprep.subr.mxu0 0.0
      %548 = vmatpush1.msra.mxu0 0.0
      %549 = vmatprep.subr.mxu0 0.0
      %550 = vmatpush1.msra.mxu0 0.0
      %551 = vmatprep.subr.mxu0 0.0
      %552 = vmatpush1.msra.mxu0 0.0
      %553 = vmatprep.mubr.f32.mxu0 0.0
      %554 = vmatmul.mubr.f32.gmra.mrb[0].mxu0 %v483
      %v555 = vpop.f32.mrb[0].mxu0
      %v556 = vadd.f32 0.0, %v555
      %v557 = vpop.f32.mrb[0].mxu0
      %v558 = vadd.f32 0.0, %v557
      %559 = vdwg.mxu0
      %v560 = vadd.f32 %v469, %v556
      %v561 = vadd.f32 %v470, %v558
      %s562 = scalar_lea.vmem %s1, 32
      %v563 = vld [vmem:[%s562] sm:$0xff]
      %564 = vrot.lane.b32.xlu0 %v205, 64
      %v565 = vpop.permute.xlu0 %564
      %566 = vrot.lane.b32.xlu0 %v212, 64
      %v567 = vpop.permute.xlu0 %566
      %568 = vrot.lane.b32.xlu0 %v206, 64
      %v569 = vpop.permute.xlu0 %568
      %vm570 = vcmask 523264
      %v571 = vsel %vm570, %v565, %v567
      %v572 = vsel %vm570, %v567, %v569
      %v574 = vsel %vm222, %v563, 0
      %v576 = vsel %vm226, %v571, 0
      %v578 = vsel %vm226, %v572, 0
      %580 = vmatprep.subr.mxu0 %v578
      %581 = vmatpush1.msra.mxu0 %v576
      %582 = vmatprep.subr.mxu0 0.0
      %583 = vmatpush1.msra.mxu0 0.0
      %584 = vmatprep.subr.mxu0 0.0
      %585 = vmatpush1.msra.mxu0 0.0
      %586 = vmatprep.subr.mxu0 0.0
      %587 = vmatpush1.msra.mxu0 0.0
      %588 = vmatprep.subr.mxu0 0.0
      %589 = vmatpush1.msra.mxu0 0.0
      %590 = vmatprep.subr.mxu0 0.0
      %591 = vmatpush1.msra.mxu0 0.0
      %592 = vmatprep.subr.mxu0 0.0
      %593 = vmatpush1.msra.mxu0 0.0
      %594 = vmatprep.subr.mxu0 0.0
      %595 = vmatpush1.msra.mxu0 0.0
      %596 = vmatprep.subr.mxu0 0.0
      %597 = vmatpush1.msra.mxu0 0.0
      %598 = vmatprep.subr.mxu0 0.0
      %599 = vmatpush1.msra.mxu0 0.0
      %600 = vmatprep.subr.mxu0 0.0
      %601 = vmatpush1.msra.mxu0 0.0
      %602 = vmatprep.subr.mxu0 0.0
      %603 = vmatpush1.msra.mxu0 0.0
      %604 = vmatprep.subr.mxu0 0.0
      %605 = vmatpush1.msra.mxu0 0.0
      %606 = vmatprep.subr.mxu0 0.0
      %607 = vmatpush1.msra.mxu0 0.0
      %608 = vmatprep.subr.mxu0 0.0
      %609 = vmatpush1.msra.mxu0 0.0
      %610 = vmatprep.subr.mxu0 0.0
      %611 = vmatpush1.msra.mxu0 0.0
      %612 = vmatprep.subr.mxu0 0.0
      %613 = vmatpush1.msra.mxu0 0.0
      %614 = vmatprep.subr.mxu0 0.0
      %615 = vmatpush1.msra.mxu0 0.0
      %616 = vmatprep.subr.mxu0 0.0
      %617 = vmatpush1.msra.mxu0 0.0
      %618 = vmatprep.subr.mxu0 0.0
      %619 = vmatpush1.msra.mxu0 0.0
      %620 = vmatprep.subr.mxu0 0.0
      %621 = vmatpush1.msra.mxu0 0.0
      %622 = vmatprep.subr.mxu0 0.0
      %623 = vmatpush1.msra.mxu0 0.0
      %624 = vmatprep.subr.mxu0 0.0
      %625 = vmatpush1.msra.mxu0 0.0
      %626 = vmatprep.subr.mxu0 0.0
      %627 = vmatpush1.msra.mxu0 0.0
      %628 = vmatprep.subr.mxu0 0.0
      %629 = vmatpush1.msra.mxu0 0.0
      %630 = vmatprep.subr.mxu0 0.0
      %631 = vmatpush1.msra.mxu0 0.0
      %632 = vmatprep.subr.mxu0 0.0
      %633 = vmatpush1.msra.mxu0 0.0
      %634 = vmatprep.subr.mxu0 0.0
      %635 = vmatpush1.msra.mxu0 0.0
      %636 = vmatprep.subr.mxu0 0.0
      %637 = vmatpush1.msra.mxu0 0.0
      %638 = vmatprep.subr.mxu0 0.0
      %639 = vmatpush1.msra.mxu0 0.0
      %640 = vmatprep.subr.mxu0 0.0
      %641 = vmatpush1.msra.mxu0 0.0
      %642 = vmatprep.subr.mxu0 0.0
      %643 = vmatpush1.msra.mxu0 0.0
      %644 = vmatprep.mubr.f32.mxu0 0.0
      %645 = vmatmul.mubr.f32.gmra.mrb[0].mxu0 %v574
      %v646 = vpop.f32.mrb[0].mxu0
      %v647 = vadd.f32 0.0, %v646
      %v648 = vpop.f32.mrb[0].mxu0
      %v649 = vadd.f32 0.0, %v648
      %650 = vdwg.mxu0
      %v651 = vadd.f32 %v560, %v647
      %v652 = vadd.f32 %v561, %v649
      %s653 = scalar_lea.vmem %s1, 40
      %v654 = vld [vmem:[%s653] sm:$0xff]
      %655 = vrot.lane.b32.xlu0 %v205, 48
      %v656 = vpop.permute.xlu0 %655
      %657 = vrot.lane.b32.xlu0 %v212, 48
      %v658 = vpop.permute.xlu0 %657
      %659 = vrot.lane.b32.xlu0 %v206, 48
      %v660 = vpop.permute.xlu0 %659
      %vm661 = vcmask 392192
      %v662 = vsel %vm661, %v656, %v658
      %v663 = vsel %vm661, %v658, %v660
      %v665 = vsel %vm222, %v654, 0
      %v667 = vsel %vm226, %v662, 0
      %v669 = vsel %vm226, %v663, 0
      %671 = vmatprep.subr.mxu0 %v669
      %672 = vmatpush1.msra.mxu0 %v667
      %673 = vmatprep.subr.mxu0 0.0
      %674 = vmatpush1.msra.mxu0 0.0
      %675 = vmatprep.subr.mxu0 0.0
      %676 = vmatpush1.msra.mxu0 0.0
      %677 = vmatprep.subr.mxu0 0.0
      %678 = vmatpush1.msra.mxu0 0.0
      %679 = vmatprep.subr.mxu0 0.0
      %680 = vmatpush1.msra.mxu0 0.0
      %681 = vmatprep.subr.mxu0 0.0
      %682 = vmatpush1.msra.mxu0 0.0
      %683 = vmatprep.subr.mxu0 0.0
      %684 = vmatpush1.msra.mxu0 0.0
      %685 = vmatprep.subr.mxu0 0.0
      %686 = vmatpush1.msra.mxu0 0.0
      %687 = vmatprep.subr.mxu0 0.0
      %688 = vmatpush1.msra.mxu0 0.0
      %689 = vmatprep.subr.mxu0 0.0
      %690 = vmatpush1.msra.mxu0 0.0
      %691 = vmatprep.subr.mxu0 0.0
      %692 = vmatpush1.msra.mxu0 0.0
      %693 = vmatprep.subr.mxu0 0.0
      %694 = vmatpush1.msra.mxu0 0.0
      %695 = vmatprep.subr.mxu0 0.0
      %696 = vmatpush1.msra.mxu0 0.0
      %697 = vmatprep.subr.mxu0 0.0
      %698 = vmatpush1.msra.mxu0 0.0
      %699 = vmatprep.subr.mxu0 0.0
      %700 = vmatpush1.msra.mxu0 0.0
      %701 = vmatprep.subr.mxu0 0.0
      %702 = vmatpush1.msra.mxu0 0.0
      %703 = vmatprep.subr.mxu0 0.0
      %704 = vmatpush1.msra.mxu0 0.0
      %705 = vmatprep.subr.mxu0 0.0
      %706 = vmatpush1.msra.mxu0 0.0
      %707 = vmatprep.subr.mxu0 0.0
      %708 = vmatpush1.msra.mxu0 0.0
      %709 = vmatprep.subr.mxu0 0.0
      %710 = vmatpush1.msra.mxu0 0.0
      %711 = vmatprep.subr.mxu0 0.0
      %712 = vmatpush1.msra.mxu0 0.0
      %713 = vmatprep.subr.mxu0 0.0
      %714 = vmatpush1.msra.mxu0 0.0
      %715 = vmatprep.subr.mxu0 0.0
      %716 = vmatpush1.msra.mxu0 0.0
      %717 = vmatprep.subr.mxu0 0.0
      %718 = vmatpush1.msra.mxu0 0.0
      %719 = vmatprep.subr.mxu0 0.0
      %720 = vmatpush1.msra.mxu0 0.0
      %721 = vmatprep.subr.mxu0 0.0
      %722 = vmatpush1.msra.mxu0 0.0
      %723 = vmatprep.subr.mxu0 0.0
      %724 = vmatpush1.msra.mxu0 0.0
      %725 = vmatprep.subr.mxu0 0.0
      %726 = vmatpush1.msra.mxu0 0.0
      %727 = vmatprep.subr.mxu0 0.0
      %728 = vmatpush1.msra.mxu0 0.0
      %729 = vmatprep.subr.mxu0 0.0
      %730 = vmatpush1.msra.mxu0 0.0
      %731 = vmatprep.subr.mxu0 0.0
      %732 = vmatpush1.msra.mxu0 0.0
      %733 = vmatprep.subr.mxu0 0.0
      %734 = vmatpush1.msra.mxu0 0.0
      %735 = vmatprep.mubr.f32.mxu0 0.0
      %736 = vmatmul.mubr.f32.gmra.mrb[0].mxu0 %v665
      %v737 = vpop.f32.mrb[0].mxu0
      %v738 = vadd.f32 0.0, %v737
      %v739 = vpop.f32.mrb[0].mxu0
      %v740 = vadd.f32 0.0, %v739
      %741 = vdwg.mxu0
      %v742 = vadd.f32 %v651, %v738
      %v743 = vadd.f32 %v652, %v740
      %s744 = scalar_lea.vmem %s1, 48
      %v745 = vld [vmem:[%s744] sm:$0xff]
      %746 = vrot.lane.b32.xlu0 %v205, 32
      %v747 = vpop.permute.xlu0 %746
      %748 = vrot.lane.b32.xlu0 %v212, 32
      %v749 = vpop.permute.xlu0 %748
      %750 = vrot.lane.b32.xlu0 %v206, 32
      %v751 = vpop.permute.xlu0 %750
      %vm752 = vcmask 261120
      %v753 = vsel %vm752, %v747, %v749
      %v754 = vsel %vm752, %v749, %v751
      %v756 = vsel %vm222, %v745, 0
      %v758 = vsel %vm226, %v753, 0
      %v760 = vsel %vm226, %v754, 0
      %762 = vmatprep.subr.mxu0 %v760
      %763 = vmatpush1.msra.mxu0 %v758
      %764 = vmatprep.subr.mxu0 0.0
      %765 = vmatpush1.msra.mxu0 0.0
      %766 = vmatprep.subr.mxu0 0.0
      %767 = vmatpush1.msra.mxu0 0.0
      %768 = vmatprep.subr.mxu0 0.0
      %769 = vmatpush1.msra.mxu0 0.0
      %770 = vmatprep.subr.mxu0 0.0
      %771 = vmatpush1.msra.mxu0 0.0
      %772 = vmatprep.subr.mxu0 0.0
      %773 = vmatpush1.msra.mxu0 0.0
      %774 = vmatprep.subr.mxu0 0.0
      %775 = vmatpush1.msra.mxu0 0.0
      %776 = vmatprep.subr.mxu0 0.0
      %777 = vmatpush1.msra.mxu0 0.0
      %778 = vmatprep.subr.mxu0 0.0
      %779 = vmatpush1.msra.mxu0 0.0
      %780 = vmatprep.subr.mxu0 0.0
      %781 = vmatpush1.msra.mxu0 0.0
      %782 = vmatprep.subr.mxu0 0.0
      %783 = vmatpush1.msra.mxu0 0.0
      %784 = vmatprep.subr.mxu0 0.0
      %785 = vmatpush1.msra.mxu0 0.0
      %786 = vmatprep.subr.mxu0 0.0
      %787 = vmatpush1.msra.mxu0 0.0
      %788 = vmatprep.subr.mxu0 0.0
      %789 = vmatpush1.msra.mxu0 0.0
      %790 = vmatprep.subr.mxu0 0.0
      %791 = vmatpush1.msra.mxu0 0.0
      %792 = vmatprep.subr.mxu0 0.0
      %793 = vmatpush1.msra.mxu0 0.0
      %794 = vmatprep.subr.mxu0 0.0
      %795 = vmatpush1.msra.mxu0 0.0
      %796 = vmatprep.subr.mxu0 0.0
      %797 = vmatpush1.msra.mxu0 0.0
      %798 = vmatprep.subr.mxu0 0.0
      %799 = vmatpush1.msra.mxu0 0.0
      %800 = vmatprep.subr.mxu0 0.0
      %801 = vmatpush1.msra.mxu0 0.0
      %802 = vmatprep.subr.mxu0 0.0
      %803 = vmatpush1.msra.mxu0 0.0
      %804 = vmatprep.subr.mxu0 0.0
      %805 = vmatpush1.msra.mxu0 0.0
      %806 = vmatprep.subr.mxu0 0.0
      %807 = vmatpush1.msra.mxu0 0.0
      %808 = vmatprep.subr.mxu0 0.0
      %809 = vmatpush1.msra.mxu0 0.0
      %810 = vmatprep.subr.mxu0 0.0
      %811 = vmatpush1.msra.mxu0 0.0
      %812 = vmatprep.subr.mxu0 0.0
      %813 = vmatpush1.msra.mxu0 0.0
      %814 = vmatprep.subr.mxu0 0.0
      %815 = vmatpush1.msra.mxu0 0.0
      %816 = vmatprep.subr.mxu0 0.0
      %817 = vmatpush1.msra.mxu0 0.0
      %818 = vmatprep.subr.mxu0 0.0
      %819 = vmatpush1.msra.mxu0 0.0
      %820 = vmatprep.subr.mxu0 0.0
      %821 = vmatpush1.msra.mxu0 0.0
      %822 = vmatprep.subr.mxu0 0.0
      %823 = vmatpush1.msra.mxu0 0.0
      %824 = vmatprep.subr.mxu0 0.0
      %825 = vmatpush1.msra.mxu0 0.0
      %826 = vmatprep.mubr.f32.mxu0 0.0
      %827 = vmatmul.mubr.f32.gmra.mrb[0].mxu0 %v756
      %v828 = vpop.f32.mrb[0].mxu0
      %v829 = vadd.f32 0.0, %v828
      %v830 = vpop.f32.mrb[0].mxu0
      %v831 = vadd.f32 0.0, %v830
      %832 = vdwg.mxu0
      %v833 = vadd.f32 %v742, %v829
      %v834 = vadd.f32 %v743, %v831
      %s835 = scalar_lea.vmem %s1, 56
      %v836 = vld [vmem:[%s835] sm:$0xff]
      %837 = vrot.lane.b32.xlu0 %v205, 16
      %v838 = vpop.permute.xlu0 %837
      %839 = vrot.lane.b32.xlu0 %v212, 16
      %v840 = vpop.permute.xlu0 %839
      %841 = vrot.lane.b32.xlu0 %v206, 16
      %v842 = vpop.permute.xlu0 %841
      %vm843 = vcmask 130048
      %v844 = vsel %vm843, %v838, %v840
      %v845 = vsel %vm843, %v840, %v842
      %v847 = vsel %vm222, %v836, 0
      %v849 = vsel %vm226, %v844, 0
      %v851 = vsel %vm226, %v845, 0
      %853 = vmatprep.subr.mxu0 %v851
      %854 = vmatpush1.msra.mxu0 %v849
      %855 = vmatprep.subr.mxu0 0.0
      %856 = vmatpush1.msra.mxu0 0.0
      %857 = vmatprep.subr.mxu0 0.0
      %858 = vmatpush1.msra.mxu0 0.0
      %859 = vmatprep.subr.mxu0 0.0
      %860 = vmatpush1.msra.mxu0 0.0
      %861 = vmatprep.subr.mxu0 0.0
      %862 = vmatpush1.msra.mxu0 0.0
      %863 = vmatprep.subr.mxu0 0.0
      %864 = vmatpush1.msra.mxu0 0.0
      %865 = vmatprep.subr.mxu0 0.0
      %866 = vmatpush1.msra.mxu0 0.0
      %867 = vmatprep.subr.mxu0 0.0
      %868 = vmatpush1.msra.mxu0 0.0
      %869 = vmatprep.subr.mxu0 0.0
      %870 = vmatpush1.msra.mxu0 0.0
      %871 = vmatprep.subr.mxu0 0.0
      %872 = vmatpush1.msra.mxu0 0.0
      %873 = vmatprep.subr.mxu0 0.0
      %874 = vmatpush1.msra.mxu0 0.0
      %875 = vmatprep.subr.mxu0 0.0
      %876 = vmatpush1.msra.mxu0 0.0
      %877 = vmatprep.subr.mxu0 0.0
      %878 = vmatpush1.msra.mxu0 0.0
      %879 = vmatprep.subr.mxu0 0.0
      %880 = vmatpush1.msra.mxu0 0.0
      %881 = vmatprep.subr.mxu0 0.0
      %882 = vmatpush1.msra.mxu0 0.0
      %883 = vmatprep.subr.mxu0 0.0
      %884 = vmatpush1.msra.mxu0 0.0
      %885 = vmatprep.subr.mxu0 0.0
      %886 = vmatpush1.msra.mxu0 0.0
      %887 = vmatprep.subr.mxu0 0.0
      %888 = vmatpush1.msra.mxu0 0.0
      %889 = vmatprep.subr.mxu0 0.0
      %890 = vmatpush1.msra.mxu0 0.0
      %891 = vmatprep.subr.mxu0 0.0
      %892 = vmatpush1.msra.mxu0 0.0
      %893 = vmatprep.subr.mxu0 0.0
      %894 = vmatpush1.msra.mxu0 0.0
      %895 = vmatprep.subr.mxu0 0.0
      %896 = vmatpush1.msra.mxu0 0.0
      %897 = vmatprep.subr.mxu0 0.0
      %898 = vmatpush1.msra.mxu0 0.0
      %899 = vmatprep.subr.mxu0 0.0
      %900 = vmatpush1.msra.mxu0 0.0
      %901 = vmatprep.subr.mxu0 0.0
      %902 = vmatpush1.msra.mxu0 0.0
      %903 = vmatprep.subr.mxu0 0.0
      %904 = vmatpush1.msra.mxu0 0.0
      %905 = vmatprep.subr.mxu0 0.0
      %906 = vmatpush1.msra.mxu0 0.0
      %907 = vmatprep.subr.mxu0 0.0
      %908 = vmatpush1.msra.mxu0 0.0
      %909 = vmatprep.subr.mxu0 0.0
      %910 = vmatpush1.msra.mxu0 0.0
      %911 = vmatprep.subr.mxu0 0.0
      %912 = vmatpush1.msra.mxu0 0.0
      %913 = vmatprep.subr.mxu0 0.0
      %914 = vmatpush1.msra.mxu0 0.0
      %915 = vmatprep.subr.mxu0 0.0
      %916 = vmatpush1.msra.mxu0 0.0
      %917 = vmatprep.mubr.f32.mxu0 0.0
      %918 = vmatmul.mubr.f32.gmra.mrb[0].mxu0 %v847
      %v919 = vpop.f32.mrb[0].mxu0
      %v920 = vadd.f32 0.0, %v919
      %v921 = vpop.f32.mrb[0].mxu0
      %v922 = vadd.f32 0.0, %v921
      %923 = vdwg.mxu0
      %v924 = vadd.f32 %v833, %v920
      %v925 = vadd.f32 %v834, %v922
      %s926 = scalar_lea.vmem %s1, 64
      %v927 = vld [vmem:[%s926] sm:$0xff]
      %v929 = vsel %vm222, %v927, 0
      %v931 = vsel %vm226, %v206, 0
      %933 = vmatprep.subr.mxu0 %v931
      %934 = vmatpush1.msra.mxu0 %v307
      %935 = vmatprep.subr.mxu0 0.0
      %936 = vmatpush1.msra.mxu0 0.0
      %937 = vmatprep.subr.mxu0 0.0
      %938 = vmatpush1.msra.mxu0 0.0
      %939 = vmatprep.subr.mxu0 0.0
      %940 = vmatpush1.msra.mxu0 0.0
      %941 = vmatprep.subr.mxu0 0.0
      %942 = vmatpush1.msra.mxu0 0.0
      %943 = vmatprep.subr.mxu0 0.0
      %944 = vmatpush1.msra.mxu0 0.0
      %945 = vmatprep.subr.mxu0 0.0
      %946 = vmatpush1.msra.mxu0 0.0
      %947 = vmatprep.subr.mxu0 0.0
      %948 = vmatpush1.msra.mxu0 0.0
      %949 = vmatprep.subr.mxu0 0.0
      %950 = vmatpush1.msra.mxu0 0.0
      %951 = vmatprep.subr.mxu0 0.0
      %952 = vmatpush1.msra.mxu0 0.0
      %953 = vmatprep.subr.mxu0 0.0
      %954 = vmatpush1.msra.mxu0 0.0
      %955 = vmatprep.subr.mxu0 0.0
      %956 = vmatpush1.msra.mxu0 0.0
      %957 = vmatprep.subr.mxu0 0.0
      %958 = vmatpush1.msra.mxu0 0.0
      %959 = vmatprep.subr.mxu0 0.0
      %960 = vmatpush1.msra.mxu0 0.0
      %961 = vmatprep.subr.mxu0 0.0
      %962 = vmatpush1.msra.mxu0 0.0
      %963 = vmatprep.subr.mxu0 0.0
      %964 = vmatpush1.msra.mxu0 0.0
      %965 = vmatprep.subr.mxu0 0.0
      %966 = vmatpush1.msra.mxu0 0.0
      %967 = vmatprep.subr.mxu0 0.0
      %968 = vmatpush1.msra.mxu0 0.0
      %969 = vmatprep.subr.mxu0 0.0
      %970 = vmatpush1.msra.mxu0 0.0
      %971 = vmatprep.subr.mxu0 0.0
      %972 = vmatpush1.msra.mxu0 0.0
      %973 = vmatprep.subr.mxu0 0.0
      %974 = vmatpush1.msra.mxu0 0.0
      %975 = vmatprep.subr.mxu0 0.0
      %976 = vmatpush1.msra.mxu0 0.0
      %977 = vmatprep.subr.mxu0 0.0
      %978 = vmatpush1.msra.mxu0 0.0
      %979 = vmatprep.subr.mxu0 0.0
      %980 = vmatpush1.msra.mxu0 0.0
      %981 = vmatprep.subr.mxu0 0.0
      %982 = vmatpush1.msra.mxu0 0.0
      %983 = vmatprep.subr.mxu0 0.0
      %984 = vmatpush1.msra.mxu0 0.0
      %985 = vmatprep.subr.mxu0 0.0
      %986 = vmatpush1.msra.mxu0 0.0
      %987 = vmatprep.subr.mxu0 0.0
      %988 = vmatpush1.msra.mxu0 0.0
      %989 = vmatprep.subr.mxu0 0.0
      %990 = vmatpush1.msra.mxu0 0.0
      %991 = vmatprep.subr.mxu0 0.0
      %992 = vmatpush1.msra.mxu0 0.0
      %993 = vmatprep.subr.mxu0 0.0
      %994 = vmatpush1.msra.mxu0 0.0
      %995 = vmatprep.subr.mxu0 0.0
      %996 = vmatpush1.msra.mxu0 0.0
      %997 = vmatprep.mubr.f32.mxu0 0.0
      %998 = vmatmul.mubr.f32.gmra.mrb[0].mxu0 %v929
      %v999 = vpop.f32.mrb[0].mxu0
      %v1000 = vadd.f32 0.0, %v999
      %v1001 = vpop.f32.mrb[0].mxu0
      %v1002 = vadd.f32 0.0, %v1001
      %1003 = vdwg.mxu0
      %v1004 = vadd.f32 %v924, %v1000
      %v1005 = vadd.f32 %v925, %v1002
      %1006 = vst [vmem:[%s199] sm:$0xff] %v1004
      %1007 = vst [vmem:[%s199 + $0x8] sm:$0xff] %v1005
      %p1008 = scmp.eq.s32.totalorder %s20, 0
      // Predicated region
      $region29: #{unit_tcn_forward.2} parent=27 // pred_check
        %p1009 = pneg %p1008
      $region30: #{unit_tcn_forward.2} parent=27 // pred_check_branch
        %1011 = sbr.rel (%p1009) target = $region32
      $region31: #{unit_tcn_forward.2} parent=27 // pred_region
        %vm1012 = vcmask 58368
        %1013 = vst.msk [vmem:[%s204] sm:$0x3] %vm1012, 0.0
      $region32: #{unit_tcn_forward.2} parent=27 // pred_fallthru
        _
      %v1014 = vadd.f32 %v1004, %v1005
      %1015 = vadd.xlane.f32.xlu0 %v1014
      %v1016 = vpop.xlane.xlu0 %1015
      %v1017 = vmul.f32 %v1004, %v1004
      %v1018 = vmul.f32 %v1005, %v1005
      %v1019 = vadd.f32 %v1017, %v1018
      %1020 = vadd.xlane.f32.xlu0 %v1019
      %v1021 = vpop.xlane.xlu0 %1020
      %v1022 = vld [vmem:[%s204] sm:$0x3]
      %v1024 = vlaneseq
      %v1025 = vand.u32 %v1024, 127
      %v1026 = vlaneseq
      %v1027 = vshrl.u32 %v1026, 7
      %v1028 = vsub.s32 %v1025, %v1027
      %v1029 = vrot.slane %v1016, %v1028
      %v1032 = vlaneseq
      %v1033 = vshrl.u32 %v1032, 7
      %v1034 = vsub.s32 %v1025, %v1033
      %v1035 = vrot.slane %v1021, %v1034
      %vm1037 = vcmask 1040384
      %v1038 = vsel %vm1037, %v1029, %v1035
      %v1039 = vadd.f32 %v1022, %v1038
      %vm1040 = vcmask 58368
      %1041 = vst.msk [vmem:[%s204] sm:$0x3] %vm1040, %v1039
      %s1042 = smul.u32 2, %s20
      %p1043 = scmp.lt.s32.totalorder %s19, 1
      %s1044 = scalar_select %p1043, %s19, 1
      %p1045 = scmp.lt.s32.totalorder %s1042, 1
      %s1046 = scalar_select %p1045, %s1042, 1
      %s1047 = smul.addr %s1044, 2
      %s1048 = sadd.s32 %s1046, %s1047
      %s1049 = smul.addr %s1048, 8
      %s1050 = scalar_lea.vmem %s2, %s1049
      %p1051 = scmp.lt.s32.totalorder %s19, 1
      %s1052 = scalar_select %p1051, %s19, 1
      %s1053 = smul.addr %s1052, 2
      %s1054 = scalar_lea.vmem %s3, %s1053
      // Predicated region
      $region33: #{unit_tcn_forward.2} parent=27 // pred_check
        %p1055 = pneg %p94
      $region34: #{unit_tcn_forward.2} parent=27 // pred_check_branch
        %1057 = sbr.rel (%p1055) target = $region36
      $region35: #{unit_tcn_forward.2} parent=27 // pred_region
        %s1058 = smul.u32 2, %s20
      $region36: #{unit_tcn_forward.2} parent=27 // pred_fallthru
        _
      // Predicated region
      $region37: #{unit_tcn_forward.2} parent=27 // pred_check
        %p1059 = pneg %p120
      $region38: #{unit_tcn_forward.2} parent=27 // pred_check_branch
        %1061 = sbr.rel (%p1059) target = $region40
      $region39: #{unit_tcn_forward.2} parent=27 // pred_region
        _
      $region40: #{unit_tcn_forward.2} parent=27 // pred_fallthru
        _
    $region28: #{unit_tcn_forward.2} parent=5 // pred_fallthru
      _
    %p1062 = scmp.le.s32.totalorder 2, %s10
    // Predicated region
    $region41: #{unit_tcn_forward.2} parent=5 // pred_check
      %p1063 = pneg %p1062
    $region42: #{unit_tcn_forward.2} parent=5 // pred_check_branch
      %1065 = sbr.rel (%p1063) target = $region44
    $region43: #{unit_tcn_forward.2} parent=5 // pred_region
      %s1066 = ssub.s32 %s10, 2
      // Predicated region
      $region45: #{unit_tcn_forward.2} parent=43 // pred_check
        %p1067 = pneg %p100
      $region46: #{unit_tcn_forward.2} parent=43 // pred_check_branch
        %1069 = sbr.rel (%p1067) target = $region48
      $region47: #{unit_tcn_forward.2} parent=43 // pred_region
        %s1070 = smul.u32 2, %s22
        %p1071 = scmp.lt.s32.totalorder %s21, 1
        %s1072 = scalar_select %p1071, %s21, 1
        %p1073 = scmp.lt.s32.totalorder %s1070, 1
        %s1074 = scalar_select %p1073, %s1070, 1
        %s1075 = smul.addr %s1072, 2
        %s1076 = sadd.s32 %s1074, %s1075
        %s1077 = smul.addr %s1076, 8
        %s1078 = scalar_lea.vmem %s2, %s1077
      $region48: #{unit_tcn_forward.2} parent=43 // pred_fallthru
        _
      // Predicated region
      $region49: #{unit_tcn_forward.2} parent=43 // pred_check
        %p1079 = pneg %p126
      $region50: #{unit_tcn_forward.2} parent=43 // pred_check_branch
        %1081 = sbr.rel (%p1079) target = $region52
      $region51: #{unit_tcn_forward.2} parent=43 // pred_region
        %p1082 = scmp.lt.s32.totalorder %s21, 1
        %s1083 = scalar_select %p1082, %s21, 1
        %s1084 = smul.addr %s1083, 2
        %s1085 = scalar_lea.vmem %s3, %s1084
      $region52: #{unit_tcn_forward.2} parent=43 // pred_fallthru
        _
    $region44: #{unit_tcn_forward.2} parent=5 // pred_fallthru
      _
  $region6: #{unit_tcn_forward.2} parent=0 // loop_footer
    %s14 = sadd.s32 1, %s10
  $region7: #{unit_tcn_forward.2} parent=0 // loop_footer_branch
    %9 = sbr.rel target = $region3
  $region8: #{unit_tcn_forward.2} parent=0 // loop_exit
    _

</llo_original>
